<compile_context>
chip_gen: v6e
topology: v6e:2x2x1
jax: 0.10.0
libtpu: 0.0.40
codegen_flags: <defaults>
</compile_context>

<pallas_src>
import functools

import jax
import jax.numpy as jnp
from jax.experimental import pallas as pl
from jax.experimental.pallas import tpu as pltpu


def _round_up(x, m):
    return ((x + m - 1) // m) * m


# --------------------------- fused GRU + FC kernel ---------------------------
def _fused_gru_fc_kernel(x_ref, wih_ref, whh_ref, bi_ref, bhn_ref,
                         fw1_ref, fb1_ref, fw2_ref, fb2_ref, out_ref,
                         *, T, Bp, H, num_layers, out_len):
    """Whole model in one launch; inter-layer activations stay in vregs.

    x_ref   : (T*Bp, H)   time-major, batch padded to Bp (multiple of 8),
                          features zero-padded to H
    wih_ref : (L, H, G)   W_ih^T per layer, gates [r|z|n] along lanes, lane-padded
    whh_ref : (L, H, G)   W_hh^T per layer, same lane layout
    bi_ref  : (L, 1, G)   b_ih with b_hh folded in for the r/z gates
    bhn_ref : (L, 1, G)   zeros except the n-gate lanes (= b_hn)
    fw1_ref : (H, H)  fb1_ref : (1, H)  fw2_ref : (H, O)  fb2_ref : (1, O)
    out_ref : (out_len*Bp, O)
    """
    x_all = x_ref[...]                                        # (T*Bp, H)
    hs = []
    for layer in range(num_layers):
        # Hoisted input projection: ONE lane-filled matmul covers all timesteps
        # and all three gates; r/z hidden biases are already folded into bi.
        gi = jnp.dot(x_all, wih_ref[layer],
                     preferred_element_type=jnp.float32) + bi_ref[layer]

        w_hh = whh_ref[layer]                                 # (H, G) loop-invariant RHS
        b_hn = bhn_ref[layer]                                 # (1, G) only n-gate lanes

        h = jnp.zeros((Bp, H), jnp.float32)
        hs = []
        # Serial recurrence: a single fused (Bp,H)@(H,G) MXU pass per step on
        # the critical path (PyTorch gate order r, z, n; b_hn inside r*(...)).
        for t in range(T):
            gh = jnp.dot(h, w_hh, preferred_element_type=jnp.float32) + b_hn
            gi_t = gi[t * Bp:(t + 1) * Bp]                    # sublane-aligned (Bp, G)
            r = jax.nn.sigmoid(gi_t[:, :H] + gh[:, :H])
            z = jax.nn.sigmoid(gi_t[:, H:2 * H] + gh[:, H:2 * H])
            n = jnp.tanh(gi_t[:, 2 * H:3 * H] + r * gh[:, 2 * H:3 * H])
            h = (1.0 - z) * n + z * h
            hs.append(h)
        if layer + 1 < num_layers:
            x_all = jnp.concatenate(hs, axis=0)               # next layer's input

    # ---- FC head epilogue on the last `out_len` timesteps ----
    tail = jnp.concatenate(hs[T - out_len:], axis=0)          # (out_len*Bp, H)
    h1 = jnp.dot(tail, fw1_ref[...],
                 preferred_element_type=jnp.float32) + fb1_ref[...]
    h1 = jnp.maximum(h1, 0.0)                                 # ReLU
    y = jnp.dot(h1, fw2_ref[...],
                preferred_element_type=jnp.float32) + fb2_ref[...]
    out_ref[...] = y.astype(out_ref.dtype)


# ------------------------------ parameter prep -------------------------------
def init_params(key, input_size, hidden_size, num_layers, output_size):
    """Synthetic parameters in PyTorch layout, uniform(-1/sqrt(H), 1/sqrt(H))."""
    k = 1.0 / (hidden_size ** 0.5)
    params = {"gru": [], "fc": None}
    for layer in range(num_layers):
        d_in = input_size if layer == 0 else hidden_size
        key, k1, k2, k3, k4 = jax.random.split(key, 5)
        params["gru"].append((
            jax.random.uniform(k1, (3 * hidden_size, d_in), jnp.float32, -k, k),
            jax.random.uniform(k2, (3 * hidden_size, hidden_size), jnp.float32, -k, k),
            jax.random.uniform(k3, (3 * hidden_size,), jnp.float32, -k, k),
            jax.random.uniform(k4, (3 * hidden_size,), jnp.float32, -k, k),
        ))
    key, k1, k2, k3, k4 = jax.random.split(key, 5)
    params["fc"] = (
        jax.random.uniform(k1, (hidden_size, hidden_size), jnp.float32, -k, k),
        jax.random.uniform(k2, (hidden_size,), jnp.float32, -k, k),
        jax.random.uniform(k3, (output_size, hidden_size), jnp.float32, -k, k),
        jax.random.uniform(k4, (output_size,), jnp.float32, -k, k),
    )
    return params


def prepare_params(params, hidden_size):
    """One-time layout work hoisted out of the per-call path:
    transpose, concatenate the three gates along lanes [r|z|n], pad lanes to
    G = roundup(3H,128), zero-pad layer-0 input rows up to H, fold b_hh for the
    r/z gates into b_ih, and stack per layer."""
    H = hidden_size
    G = _round_up(3 * H, 128)
    wih, whh, bi, bhn = [], [], [], []
    for (w_ih, w_hh, b_ih, b_hh) in params["gru"]:
        d_in = w_ih.shape[1]
        assert d_in <= H, "TODO(synk): input_size > hidden_size needs its own layer-0 slab"
        wih.append(jnp.pad(jnp.transpose(w_ih), ((0, H - d_in), (0, G - 3 * H))))   # (H, G)
        whh.append(jnp.pad(jnp.transpose(w_hh), ((0, 0), (0, G - 3 * H))))          # (H, G)
        bi_l = jnp.concatenate([b_ih[:2 * H] + b_hh[:2 * H], b_ih[2 * H:]])         # fold r/z
        bi.append(jnp.pad(bi_l, (0, G - 3 * H)).reshape(1, G))
        bhn_l = jnp.concatenate([jnp.zeros((2 * H,), jnp.float32), b_hh[2 * H:]])
        bhn.append(jnp.pad(bhn_l, (0, G - 3 * H)).reshape(1, G))
    w1, b1, w2, b2 = params["fc"]
    return {
        "wih": jnp.stack(wih),                  # (L, H, G)
        "whh": jnp.stack(whh),                  # (L, H, G)
        "bi": jnp.stack(bi),                    # (L, 1, G)
        "bhn": jnp.stack(bhn),                  # (L, 1, G)
        "fw1": jnp.transpose(w1),               # (H, H)
        "fb1": b1.reshape(1, H),                # (1, H)
        "fw2": jnp.transpose(w2),               # (H, O)
        "fb2": b2.reshape(1, w2.shape[0]),      # (1, O)
    }


# ------------------------------ model wrapper --------------------------------
@functools.partial(jax.jit, static_argnames=("output_length",))
def grumodel_forward(kparams, x, output_length=1):
    """x: (B, T, input_size) batch_first, like the PyTorch module. -> (B, L, O)."""
    B, T, D = x.shape
    L, H, _ = kparams["whh"].shape
    O = kparams["fw2"].shape[-1]
    assert output_length <= T, "output_length must be <= sequence length"
    assert D <= H, "input_size > hidden_size not supported"
    Bp = _round_up(B, 8)

    # Tiny one-time layout prep (fuses under jit): time-major, batch padded to
    # a full sublane group, features zero-padded to H.
    x_tm = jnp.transpose(x, (1, 0, 2)).astype(jnp.float32)    # (T, B, D)
    x_tm = jnp.pad(x_tm, ((0, 0), (0, Bp - B), (0, H - D)))   # (T, Bp, H)
    x_2d = x_tm.reshape(T * Bp, H)

    kernel = functools.partial(_fused_gru_fc_kernel, T=T, Bp=Bp, H=H,
                               num_layers=L, out_len=output_length)
    y = pl.pallas_call(
        kernel,
        out_shape=jax.ShapeDtypeStruct((output_length * Bp, O), jnp.float32),
        compiler_params=pltpu.CompilerParams(vmem_limit_bytes=32 * 1024 * 1024),
    )(x_2d, kparams["wih"], kparams["whh"], kparams["bi"], kparams["bhn"],
      kparams["fw1"], kparams["fb1"], kparams["fw2"], kparams["fb2"])

    y = y.reshape(output_length, Bp, O)[:, :B, :]
    return jnp.transpose(y, (1, 0, 2))                        # (B, output_length, O)


# ----------------------------- pure-JAX reference -----------------------------
def _reference_forward(params, x, output_length=1):
    """Plain XLA reference with PyTorch GRU semantics, used for validation."""
    B, T, _ = x.shape
    seq = jnp.transpose(x, (1, 0, 2)).astype(jnp.float32)     # (T, B, D)
    for (w_ih, w_hh, b_ih, b_hh) in params["gru"]:
        H = w_hh.shape[1]
        h = jnp.zeros((B, H), jnp.float32)
        outs = []
        for t in range(T):
            gi = seq[t] @ w_ih.T + b_ih
            gh = h @ w_hh.T + b_hh
            r = jax.nn.sigmoid(gi[:, :H] + gh[:, :H])
            z = jax.nn.sigmoid(gi[:, H:2 * H] + gh[:, H:2 * H])
            n = jnp.tanh(gi[:, 2 * H:] + r * gh[:, 2 * H:])
            h = (1.0 - z) * n + z * h
            outs.append(h)
        seq = jnp.stack(outs, axis=0)                          # (T, B, H)
    tail = jnp.transpose(seq, (1, 0, 2))[:, -output_length:, :]
    w1, b1, w2, b2 = params["fc"]
    h1 = jnp.maximum(tail @ w1.T + b1, 0.0)
    return h1 @ w2.T + b2


# ------------------------------------ main ------------------------------------
if __name__ == "__main__":
    batch, seq_len = 2, 8
    input_size, hidden_size, num_layers = 4, 32, 2
    output_size, output_length = 4, 1

    key = jax.random.PRNGKey(0)
    key, kx, kp = jax.random.split(key, 3)
    x = jax.random.normal(kx, (batch, seq_len, input_size), jnp.float32)
    params = init_params(kp, input_size, hidden_size, num_layers, output_size)
    kparams = prepare_params(params, hidden_size)

    y = grumodel_forward(kparams, x, output_length=output_length)
    y = jax.block_until_ready(y)
    assert y.shape == (batch, output_length, output_size)

    y_ref = _reference_forward(params, x, output_length=output_length)
    assert jnp.allclose(y, y_ref, atol=1e-4, rtol=1e-4), float(
        jnp.max(jnp.abs(y - y_ref)))

    print("KERNEL_OK")
</pallas_src>

<mosaic_0001>
module attributes {stable_mosaic.version = 11 : i64} {
  func.func @_fused_gru_fc_kernel(%arg0: memref<64x32xf32, #tpu.memory_space<vmem>>, %arg1: memref<2x32x128xf32, #tpu.memory_space<vmem>>, %arg2: memref<2x32x128xf32, #tpu.memory_space<vmem>>, %arg3: memref<2x1x128xf32, #tpu.memory_space<vmem>>, %arg4: memref<2x1x128xf32, #tpu.memory_space<vmem>>, %arg5: memref<32x32xf32, #tpu.memory_space<vmem>>, %arg6: memref<1x32xf32, #tpu.memory_space<vmem>>, %arg7: memref<32x4xf32, #tpu.memory_space<vmem>>, %arg8: memref<1x4xf32, #tpu.memory_space<vmem>>, %arg9: memref<8x4xf32, #tpu.memory_space<vmem>>) attributes {dimension_semantics = [], scalar_prefetch = 0 : i64, scratch_operands = 0 : i64, tpu.core_type = #tpu.core_type<tc>} {
    %c0 = arith.constant 0 : index
    %c0_0 = arith.constant 0 : index
    %0 = vector.load %arg0[%c0, %c0_0] : memref<64x32xf32, #tpu.memory_space<vmem>>, vector<64x32xf32>
    %c0_1 = arith.constant 0 : index
    %c0_2 = arith.constant 0 : index
    %c0_3 = arith.constant 0 : index
    %1 = vector.load %arg1[%c0_1, %c0_2, %c0_3] : memref<2x32x128xf32, #tpu.memory_space<vmem>>, vector<1x32x128xf32>
    %2 = vector.shape_cast %1 : vector<1x32x128xf32> to vector<32x128xf32>
    %cst = arith.constant dense<0.000000e+00> : vector<64x128xf32>
    %3 = tpu.matmul %0, %2, %cst {dimension_numbers = #tpu.dot_dimension_numbers<[1], [0], [0], [1], [0, 0, 1, 1], [], []>} : vector<64x32xf32>, vector<32x128xf32>, vector<64x128xf32> -> vector<64x128xf32>
    %c0_4 = arith.constant 0 : index
    %c0_5 = arith.constant 0 : index
    %c0_6 = arith.constant 0 : index
    %4 = vector.load %arg3[%c0_4, %c0_5, %c0_6] : memref<2x1x128xf32, #tpu.memory_space<vmem>>, vector<1x1x128xf32>
    %5 = vector.shape_cast %4 : vector<1x1x128xf32> to vector<1x128xf32>
    %6 = vector.broadcast %5 : vector<1x128xf32> to vector<64x128xf32>
    %7 = arith.addf %3, %6 : vector<64x128xf32>
    %c0_7 = arith.constant 0 : index
    %c0_8 = arith.constant 0 : index
    %c0_9 = arith.constant 0 : index
    %8 = vector.load %arg2[%c0_7, %c0_8, %c0_9] : memref<2x32x128xf32, #tpu.memory_space<vmem>>, vector<1x32x128xf32>
    %9 = vector.shape_cast %8 : vector<1x32x128xf32> to vector<32x128xf32>
    %c0_10 = arith.constant 0 : index
    %c0_11 = arith.constant 0 : index
    %c0_12 = arith.constant 0 : index
    %10 = vector.load %arg4[%c0_10, %c0_11, %c0_12] : memref<2x1x128xf32, #tpu.memory_space<vmem>>, vector<1x1x128xf32>
    %11 = vector.shape_cast %10 : vector<1x1x128xf32> to vector<1x128xf32>
    %cst_13 = arith.constant 0.000000e+00 : f32
    %12 = vector.broadcast %cst_13 : f32 to vector<8x32xf32>
    %cst_14 = arith.constant dense<0.000000e+00> : vector<8x128xf32>
    %13 = tpu.matmul %12, %9, %cst_14 {dimension_numbers = #tpu.dot_dimension_numbers<[1], [0], [0], [1], [0, 0, 1, 1], [], []>} : vector<8x32xf32>, vector<32x128xf32>, vector<8x128xf32> -> vector<8x128xf32>
    %14 = vector.broadcast %11 : vector<1x128xf32> to vector<8x128xf32>
    %15 = arith.addf %13, %14 : vector<8x128xf32>
    %16 = vector.extract_strided_slice %7 {offsets = [0, 0], sizes = [8, 128], strides = [1, 1]} : vector<64x128xf32> to vector<8x128xf32>
    %17 = vector.extract_strided_slice %16 {offsets = [0, 0], sizes = [8, 32], strides = [1, 1]} : vector<8x128xf32> to vector<8x32xf32>
    %18 = vector.extract_strided_slice %15 {offsets = [0, 0], sizes = [8, 32], strides = [1, 1]} : vector<8x128xf32> to vector<8x32xf32>
    %19 = arith.addf %17, %18 : vector<8x32xf32>
    %20 = arith.negf %19 : vector<8x32xf32>
    %21 = math.exp %20 : vector<8x32xf32>
    %cst_15 = arith.constant 1.000000e+00 : f32
    %22 = vector.broadcast %cst_15 : f32 to vector<8x32xf32>
    %23 = arith.addf %22, %21 : vector<8x32xf32>
    %24 = arith.divf %22, %23 : vector<8x32xf32>
    %25 = vector.extract_strided_slice %16 {offsets = [0, 32], sizes = [8, 32], strides = [1, 1]} : vector<8x128xf32> to vector<8x32xf32>
    %26 = vector.extract_strided_slice %15 {offsets = [0, 32], sizes = [8, 32], strides = [1, 1]} : vector<8x128xf32> to vector<8x32xf32>
    %27 = arith.addf %25, %26 : vector<8x32xf32>
    %28 = arith.negf %27 : vector<8x32xf32>
    %29 = math.exp %28 : vector<8x32xf32>
    %cst_16 = arith.constant 1.000000e+00 : f32
    %30 = vector.broadcast %cst_16 : f32 to vector<8x32xf32>
    %31 = arith.addf %30, %29 : vector<8x32xf32>
    %32 = arith.divf %30, %31 : vector<8x32xf32>
    %33 = vector.extract_strided_slice %16 {offsets = [0, 64], sizes = [8, 32], strides = [1, 1]} : vector<8x128xf32> to vector<8x32xf32>
    %34 = vector.extract_strided_slice %15 {offsets = [0, 64], sizes = [8, 32], strides = [1, 1]} : vector<8x128xf32> to vector<8x32xf32>
    %35 = arith.mulf %24, %34 : vector<8x32xf32>
    %36 = arith.addf %33, %35 : vector<8x32xf32>
    %37 = math.tanh %36 : vector<8x32xf32>
    %cst_17 = arith.constant 1.000000e+00 : f32
    %38 = vector.broadcast %cst_17 : f32 to vector<8x32xf32>
    %39 = arith.subf %38, %32 : vector<8x32xf32>
    %40 = arith.mulf %39, %37 : vector<8x32xf32>
    %41 = arith.mulf %32, %12 : vector<8x32xf32>
    %42 = arith.addf %40, %41 : vector<8x32xf32>
    %cst_18 = arith.constant dense<0.000000e+00> : vector<8x128xf32>
    %43 = tpu.matmul %42, %9, %cst_18 {dimension_numbers = #tpu.dot_dimension_numbers<[1], [0], [0], [1], [0, 0, 1, 1], [], []>} : vector<8x32xf32>, vector<32x128xf32>, vector<8x128xf32> -> vector<8x128xf32>
    %44 = vector.broadcast %11 : vector<1x128xf32> to vector<8x128xf32>
    %45 = arith.addf %43, %44 : vector<8x128xf32>
    %46 = vector.extract_strided_slice %7 {offsets = [8, 0], sizes = [8, 128], strides = [1, 1]} : vector<64x128xf32> to vector<8x128xf32>
    %47 = vector.extract_strided_slice %46 {offsets = [0, 0], sizes = [8, 32], strides = [1, 1]} : vector<8x128xf32> to vector<8x32xf32>
    %48 = vector.extract_strided_slice %45 {offsets = [0, 0], sizes = [8, 32], strides = [1, 1]} : vector<8x128xf32> to vector<8x32xf32>
    %49 = arith.addf %47, %48 : vector<8x32xf32>
    %50 = arith.negf %49 : vector<8x32xf32>
    %51 = math.exp %50 : vector<8x32xf32>
    %cst_19 = arith.constant 1.000000e+00 : f32
    %52 = vector.broadcast %cst_19 : f32 to vector<8x32xf32>
    %53 = arith.addf %52, %51 : vector<8x32xf32>
    %54 = arith.divf %52, %53 : vector<8x32xf32>
    %55 = vector.extract_strided_slice %46 {offsets = [0, 32], sizes = [8, 32], strides = [1, 1]} : vector<8x128xf32> to vector<8x32xf32>
    %56 = vector.extract_strided_slice %45 {offsets = [0, 32], sizes = [8, 32], strides = [1, 1]} : vector<8x128xf32> to vector<8x32xf32>
    %57 = arith.addf %55, %56 : vector<8x32xf32>
    %58 = arith.negf %57 : vector<8x32xf32>
    %59 = math.exp %58 : vector<8x32xf32>
    %cst_20 = arith.constant 1.000000e+00 : f32
    %60 = vector.broadcast %cst_20 : f32 to vector<8x32xf32>
    %61 = arith.addf %60, %59 : vector<8x32xf32>
    %62 = arith.divf %60, %61 : vector<8x32xf32>
    %63 = vector.extract_strided_slice %46 {offsets = [0, 64], sizes = [8, 32], strides = [1, 1]} : vector<8x128xf32> to vector<8x32xf32>
    %64 = vector.extract_strided_slice %45 {offsets = [0, 64], sizes = [8, 32], strides = [1, 1]} : vector<8x128xf32> to vector<8x32xf32>
    %65 = arith.mulf %54, %64 : vector<8x32xf32>
    %66 = arith.addf %63, %65 : vector<8x32xf32>
    %67 = math.tanh %66 : vector<8x32xf32>
    %cst_21 = arith.constant 1.000000e+00 : f32
    %68 = vector.broadcast %cst_21 : f32 to vector<8x32xf32>
    %69 = arith.subf %68, %62 : vector<8x32xf32>
    %70 = arith.mulf %69, %67 : vector<8x32xf32>
    %71 = arith.mulf %62, %42 : vector<8x32xf32>
    %72 = arith.addf %70, %71 : vector<8x32xf32>
    %cst_22 = arith.constant dense<0.000000e+00> : vector<8x128xf32>
    %73 = tpu.matmul %72, %9, %cst_22 {dimension_numbers = #tpu.dot_dimension_numbers<[1], [0], [0], [1], [0, 0, 1, 1], [], []>} : vector<8x32xf32>, vector<32x128xf32>, vector<8x128xf32> -> vector<8x128xf32>
    %74 = vector.broadcast %11 : vector<1x128xf32> to vector<8x128xf32>
    %75 = arith.addf %73, %74 : vector<8x128xf32>
    %76 = vector.extract_strided_slice %7 {offsets = [16, 0], sizes = [8, 128], strides = [1, 1]} : vector<64x128xf32> to vector<8x128xf32>
    %77 = vector.extract_strided_slice %76 {offsets = [0, 0], sizes = [8, 32], strides = [1, 1]} : vector<8x128xf32> to vector<8x32xf32>
    %78 = vector.extract_strided_slice %75 {offsets = [0, 0], sizes = [8, 32], strides = [1, 1]} : vector<8x128xf32> to vector<8x32xf32>
    %79 = arith.addf %77, %78 : vector<8x32xf32>
    %80 = arith.negf %79 : vector<8x32xf32>
    %81 = math.exp %80 : vector<8x32xf32>
    %cst_23 = arith.constant 1.000000e+00 : f32
    %82 = vector.broadcast %cst_23 : f32 to vector<8x32xf32>
    %83 = arith.addf %82, %81 : vector<8x32xf32>
    %84 = arith.divf %82, %83 : vector<8x32xf32>
    %85 = vector.extract_strided_slice %76 {offsets = [0, 32], sizes = [8, 32], strides = [1, 1]} : vector<8x128xf32> to vector<8x32xf32>
    %86 = vector.extract_strided_slice %75 {offsets = [0, 32], sizes = [8, 32], strides = [1, 1]} : vector<8x128xf32> to vector<8x32xf32>
    %87 = arith.addf %85, %86 : vector<8x32xf32>
    %88 = arith.negf %87 : vector<8x32xf32>
    %89 = math.exp %88 : vector<8x32xf32>
    %cst_24 = arith.constant 1.000000e+00 : f32
    %90 = vector.broadcast %cst_24 : f32 to vector<8x32xf32>
    %91 = arith.addf %90, %89 : vector<8x32xf32>
    %92 = arith.divf %90, %91 : vector<8x32xf32>
    %93 = vector.extract_strided_slice %76 {offsets = [0, 64], sizes = [8, 32], strides = [1, 1]} : vector<8x128xf32> to vector<8x32xf32>
    %94 = vector.extract_strided_slice %75 {offsets = [0, 64], sizes = [8, 32], strides = [1, 1]} : vector<8x128xf32> to vector<8x32xf32>
    %95 = arith.mulf %84, %94 : vector<8x32xf32>
    %96 = arith.addf %93, %95 : vector<8x32xf32>
    %97 = math.tanh %96 : vector<8x32xf32>
    %cst_25 = arith.constant 1.000000e+00 : f32
    %98 = vector.broadcast %cst_25 : f32 to vector<8x32xf32>
    %99 = arith.subf %98, %92 : vector<8x32xf32>
    %100 = arith.mulf %99, %97 : vector<8x32xf32>
    %101 = arith.mulf %92, %72 : vector<8x32xf32>
    %102 = arith.addf %100, %101 : vector<8x32xf32>
    %cst_26 = arith.constant dense<0.000000e+00> : vector<8x128xf32>
    %103 = tpu.matmul %102, %9, %cst_26 {dimension_numbers = #tpu.dot_dimension_numbers<[1], [0], [0], [1], [0, 0, 1, 1], [], []>} : vector<8x32xf32>, vector<32x128xf32>, vector<8x128xf32> -> vector<8x128xf32>
    %104 = vector.broadcast %11 : vector<1x128xf32> to vector<8x128xf32>
    %105 = arith.addf %103, %104 : vector<8x128xf32>
    %106 = vector.extract_strided_slice %7 {offsets = [24, 0], sizes = [8, 128], strides = [1, 1]} : vector<64x128xf32> to vector<8x128xf32>
    %107 = vector.extract_strided_slice %106 {offsets = [0, 0], sizes = [8, 32], strides = [1, 1]} : vector<8x128xf32> to vector<8x32xf32>
    %108 = vector.extract_strided_slice %105 {offsets = [0, 0], sizes = [8, 32], strides = [1, 1]} : vector<8x128xf32> to vector<8x32xf32>
    %109 = arith.addf %107, %108 : vector<8x32xf32>
    %110 = arith.negf %109 : vector<8x32xf32>
    %111 = math.exp %110 : vector<8x32xf32>
    %cst_27 = arith.constant 1.000000e+00 : f32
    %112 = vector.broadcast %cst_27 : f32 to vector<8x32xf32>
    %113 = arith.addf %112, %111 : vector<8x32xf32>
    %114 = arith.divf %112, %113 : vector<8x32xf32>
    %115 = vector.extract_strided_slice %106 {offsets = [0, 32], sizes = [8, 32], strides = [1, 1]} : vector<8x128xf32> to vector<8x32xf32>
    %116 = vector.extract_strided_slice %105 {offsets = [0, 32], sizes = [8, 32], strides = [1, 1]} : vector<8x128xf32> to vector<8x32xf32>
    %117 = arith.addf %115, %116 : vector<8x32xf32>
    %118 = arith.negf %117 : vector<8x32xf32>
    %119 = math.exp %118 : vector<8x32xf32>
    %cst_28 = arith.constant 1.000000e+00 : f32
    %120 = vector.broadcast %cst_28 : f32 to vector<8x32xf32>
    %121 = arith.addf %120, %119 : vector<8x32xf32>
    %122 = arith.divf %120, %121 : vector<8x32xf32>
    %123 = vector.extract_strided_slice %106 {offsets = [0, 64], sizes = [8, 32], strides = [1, 1]} : vector<8x128xf32> to vector<8x32xf32>
    %124 = vector.extract_strided_slice %105 {offsets = [0, 64], sizes = [8, 32], strides = [1, 1]} : vector<8x128xf32> to vector<8x32xf32>
    %125 = arith.mulf %114, %124 : vector<8x32xf32>
    %126 = arith.addf %123, %125 : vector<8x32xf32>
    %127 = math.tanh %126 : vector<8x32xf32>
    %cst_29 = arith.constant 1.000000e+00 : f32
    %128 = vector.broadcast %cst_29 : f32 to vector<8x32xf32>
    %129 = arith.subf %128, %122 : vector<8x32xf32>
    %130 = arith.mulf %129, %127 : vector<8x32xf32>
    %131 = arith.mulf %122, %102 : vector<8x32xf32>
    %132 = arith.addf %130, %131 : vector<8x32xf32>
    %cst_30 = arith.constant dense<0.000000e+00> : vector<8x128xf32>
    %133 = tpu.matmul %132, %9, %cst_30 {dimension_numbers = #tpu.dot_dimension_numbers<[1], [0], [0], [1], [0, 0, 1, 1], [], []>} : vector<8x32xf32>, vector<32x128xf32>, vector<8x128xf32> -> vector<8x128xf32>
    %134 = vector.broadcast %11 : vector<1x128xf32> to vector<8x128xf32>
    %135 = arith.addf %133, %134 : vector<8x128xf32>
    %136 = vector.extract_strided_slice %7 {offsets = [32, 0], sizes = [8, 128], strides = [1, 1]} : vector<64x128xf32> to vector<8x128xf32>
    %137 = vector.extract_strided_slice %136 {offsets = [0, 0], sizes = [8, 32], strides = [1, 1]} : vector<8x128xf32> to vector<8x32xf32>
    %138 = vector.extract_strided_slice %135 {offsets = [0, 0], sizes = [8, 32], strides = [1, 1]} : vector<8x128xf32> to vector<8x32xf32>
    %139 = arith.addf %137, %138 : vector<8x32xf32>
    %140 = arith.negf %139 : vector<8x32xf32>
    %141 = math.exp %140 : vector<8x32xf32>
    %cst_31 = arith.constant 1.000000e+00 : f32
    %142 = vector.broadcast %cst_31 : f32 to vector<8x32xf32>
    %143 = arith.addf %142, %141 : vector<8x32xf32>
    %144 = arith.divf %142, %143 : vector<8x32xf32>
    %145 = vector.extract_strided_slice %136 {offsets = [0, 32], sizes = [8, 32], strides = [1, 1]} : vector<8x128xf32> to vector<8x32xf32>
    %146 = vector.extract_strided_slice %135 {offsets = [0, 32], sizes = [8, 32], strides = [1, 1]} : vector<8x128xf32> to vector<8x32xf32>
    %147 = arith.addf %145, %146 : vector<8x32xf32>
    %148 = arith.negf %147 : vector<8x32xf32>
    %149 = math.exp %148 : vector<8x32xf32>
    %cst_32 = arith.constant 1.000000e+00 : f32
    %150 = vector.broadcast %cst_32 : f32 to vector<8x32xf32>
    %151 = arith.addf %150, %149 : vector<8x32xf32>
    %152 = arith.divf %150, %151 : vector<8x32xf32>
    %153 = vector.extract_strided_slice %136 {offsets = [0, 64], sizes = [8, 32], strides = [1, 1]} : vector<8x128xf32> to vector<8x32xf32>
    %154 = vector.extract_strided_slice %135 {offsets = [0, 64], sizes = [8, 32], strides = [1, 1]} : vector<8x128xf32> to vector<8x32xf32>
    %155 = arith.mulf %144, %154 : vector<8x32xf32>
    %156 = arith.addf %153, %155 : vector<8x32xf32>
    %157 = math.tanh %156 : vector<8x32xf32>
    %cst_33 = arith.constant 1.000000e+00 : f32
    %158 = vector.broadcast %cst_33 : f32 to vector<8x32xf32>
    %159 = arith.subf %158, %152 : vector<8x32xf32>
    %160 = arith.mulf %159, %157 : vector<8x32xf32>
    %161 = arith.mulf %152, %132 : vector<8x32xf32>
    %162 = arith.addf %160, %161 : vector<8x32xf32>
    %cst_34 = arith.constant dense<0.000000e+00> : vector<8x128xf32>
    %163 = tpu.matmul %162, %9, %cst_34 {dimension_numbers = #tpu.dot_dimension_numbers<[1], [0], [0], [1], [0, 0, 1, 1], [], []>} : vector<8x32xf32>, vector<32x128xf32>, vector<8x128xf32> -> vector<8x128xf32>
    %164 = vector.broadcast %11 : vector<1x128xf32> to vector<8x128xf32>
    %165 = arith.addf %163, %164 : vector<8x128xf32>
    %166 = vector.extract_strided_slice %7 {offsets = [40, 0], sizes = [8, 128], strides = [1, 1]} : vector<64x128xf32> to vector<8x128xf32>
    %167 = vector.extract_strided_slice %166 {offsets = [0, 0], sizes = [8, 32], strides = [1, 1]} : vector<8x128xf32> to vector<8x32xf32>
    %168 = vector.extract_strided_slice %165 {offsets = [0, 0], sizes = [8, 32], strides = [1, 1]} : vector<8x128xf32> to vector<8x32xf32>
    %169 = arith.addf %167, %168 : vector<8x32xf32>
    %170 = arith.negf %169 : vector<8x32xf32>
    %171 = math.exp %170 : vector<8x32xf32>
    %cst_35 = arith.constant 1.000000e+00 : f32
    %172 = vector.broadcast %cst_35 : f32 to vector<8x32xf32>
    %173 = arith.addf %172, %171 : vector<8x32xf32>
    %174 = arith.divf %172, %173 : vector<8x32xf32>
    %175 = vector.extract_strided_slice %166 {offsets = [0, 32], sizes = [8, 32], strides = [1, 1]} : vector<8x128xf32> to vector<8x32xf32>
    %176 = vector.extract_strided_slice %165 {offsets = [0, 32], sizes = [8, 32], strides = [1, 1]} : vector<8x128xf32> to vector<8x32xf32>
    %177 = arith.addf %175, %176 : vector<8x32xf32>
    %178 = arith.negf %177 : vector<8x32xf32>
    %179 = math.exp %178 : vector<8x32xf32>
    %cst_36 = arith.constant 1.000000e+00 : f32
    %180 = vector.broadcast %cst_36 : f32 to vector<8x32xf32>
    %181 = arith.addf %180, %179 : vector<8x32xf32>
    %182 = arith.divf %180, %181 : vector<8x32xf32>
    %183 = vector.extract_strided_slice %166 {offsets = [0, 64], sizes = [8, 32], strides = [1, 1]} : vector<8x128xf32> to vector<8x32xf32>
    %184 = vector.extract_strided_slice %165 {offsets = [0, 64], sizes = [8, 32], strides = [1, 1]} : vector<8x128xf32> to vector<8x32xf32>
    %185 = arith.mulf %174, %184 : vector<8x32xf32>
    %186 = arith.addf %183, %185 : vector<8x32xf32>
    %187 = math.tanh %186 : vector<8x32xf32>
    %cst_37 = arith.constant 1.000000e+00 : f32
    %188 = vector.broadcast %cst_37 : f32 to vector<8x32xf32>
    %189 = arith.subf %188, %182 : vector<8x32xf32>
    %190 = arith.mulf %189, %187 : vector<8x32xf32>
    %191 = arith.mulf %182, %162 : vector<8x32xf32>
    %192 = arith.addf %190, %191 : vector<8x32xf32>
    %cst_38 = arith.constant dense<0.000000e+00> : vector<8x128xf32>
    %193 = tpu.matmul %192, %9, %cst_38 {dimension_numbers = #tpu.dot_dimension_numbers<[1], [0], [0], [1], [0, 0, 1, 1], [], []>} : vector<8x32xf32>, vector<32x128xf32>, vector<8x128xf32> -> vector<8x128xf32>
    %194 = vector.broadcast %11 : vector<1x128xf32> to vector<8x128xf32>
    %195 = arith.addf %193, %194 : vector<8x128xf32>
    %196 = vector.extract_strided_slice %7 {offsets = [48, 0], sizes = [8, 128], strides = [1, 1]} : vector<64x128xf32> to vector<8x128xf32>
    %197 = vector.extract_strided_slice %196 {offsets = [0, 0], sizes = [8, 32], strides = [1, 1]} : vector<8x128xf32> to vector<8x32xf32>
    %198 = vector.extract_strided_slice %195 {offsets = [0, 0], sizes = [8, 32], strides = [1, 1]} : vector<8x128xf32> to vector<8x32xf32>
    %199 = arith.addf %197, %198 : vector<8x32xf32>
    %200 = arith.negf %199 : vector<8x32xf32>
    %201 = math.exp %200 : vector<8x32xf32>
    %cst_39 = arith.constant 1.000000e+00 : f32
    %202 = vector.broadcast %cst_39 : f32 to vector<8x32xf32>
    %203 = arith.addf %202, %201 : vector<8x32xf32>
    %204 = arith.divf %202, %203 : vector<8x32xf32>
    %205 = vector.extract_strided_slice %196 {offsets = [0, 32], sizes = [8, 32], strides = [1, 1]} : vector<8x128xf32> to vector<8x32xf32>
    %206 = vector.extract_strided_slice %195 {offsets = [0, 32], sizes = [8, 32], strides = [1, 1]} : vector<8x128xf32> to vector<8x32xf32>
    %207 = arith.addf %205, %206 : vector<8x32xf32>
    %208 = arith.negf %207 : vector<8x32xf32>
    %209 = math.exp %208 : vector<8x32xf32>
    %cst_40 = arith.constant 1.000000e+00 : f32
    %210 = vector.broadcast %cst_40 : f32 to vector<8x32xf32>
    %211 = arith.addf %210, %209 : vector<8x32xf32>
    %212 = arith.divf %210, %211 : vector<8x32xf32>
    %213 = vector.extract_strided_slice %196 {offsets = [0, 64], sizes = [8, 32], strides = [1, 1]} : vector<8x128xf32> to vector<8x32xf32>
    %214 = vector.extract_strided_slice %195 {offsets = [0, 64], sizes = [8, 32], strides = [1, 1]} : vector<8x128xf32> to vector<8x32xf32>
    %215 = arith.mulf %204, %214 : vector<8x32xf32>
    %216 = arith.addf %213, %215 : vector<8x32xf32>
    %217 = math.tanh %216 : vector<8x32xf32>
    %cst_41 = arith.constant 1.000000e+00 : f32
    %218 = vector.broadcast %cst_41 : f32 to vector<8x32xf32>
    %219 = arith.subf %218, %212 : vector<8x32xf32>
    %220 = arith.mulf %219, %217 : vector<8x32xf32>
    %221 = arith.mulf %212, %192 : vector<8x32xf32>
    %222 = arith.addf %220, %221 : vector<8x32xf32>
    %cst_42 = arith.constant dense<0.000000e+00> : vector<8x128xf32>
    %223 = tpu.matmul %222, %9, %cst_42 {dimension_numbers = #tpu.dot_dimension_numbers<[1], [0], [0], [1], [0, 0, 1, 1], [], []>} : vector<8x32xf32>, vector<32x128xf32>, vector<8x128xf32> -> vector<8x128xf32>
    %224 = vector.broadcast %11 : vector<1x128xf32> to vector<8x128xf32>
    %225 = arith.addf %223, %224 : vector<8x128xf32>
    %226 = vector.extract_strided_slice %7 {offsets = [56, 0], sizes = [8, 128], strides = [1, 1]} : vector<64x128xf32> to vector<8x128xf32>
    %227 = vector.extract_strided_slice %226 {offsets = [0, 0], sizes = [8, 32], strides = [1, 1]} : vector<8x128xf32> to vector<8x32xf32>
    %228 = vector.extract_strided_slice %225 {offsets = [0, 0], sizes = [8, 32], strides = [1, 1]} : vector<8x128xf32> to vector<8x32xf32>
    %229 = arith.addf %227, %228 : vector<8x32xf32>
    %230 = arith.negf %229 : vector<8x32xf32>
    %231 = math.exp %230 : vector<8x32xf32>
    %cst_43 = arith.constant 1.000000e+00 : f32
    %232 = vector.broadcast %cst_43 : f32 to vector<8x32xf32>
    %233 = arith.addf %232, %231 : vector<8x32xf32>
    %234 = arith.divf %232, %233 : vector<8x32xf32>
    %235 = vector.extract_strided_slice %226 {offsets = [0, 32], sizes = [8, 32], strides = [1, 1]} : vector<8x128xf32> to vector<8x32xf32>
    %236 = vector.extract_strided_slice %225 {offsets = [0, 32], sizes = [8, 32], strides = [1, 1]} : vector<8x128xf32> to vector<8x32xf32>
    %237 = arith.addf %235, %236 : vector<8x32xf32>
    %238 = arith.negf %237 : vector<8x32xf32>
    %239 = math.exp %238 : vector<8x32xf32>
    %cst_44 = arith.constant 1.000000e+00 : f32
    %240 = vector.broadcast %cst_44 : f32 to vector<8x32xf32>
    %241 = arith.addf %240, %239 : vector<8x32xf32>
    %242 = arith.divf %240, %241 : vector<8x32xf32>
    %243 = vector.extract_strided_slice %226 {offsets = [0, 64], sizes = [8, 32], strides = [1, 1]} : vector<8x128xf32> to vector<8x32xf32>
    %244 = vector.extract_strided_slice %225 {offsets = [0, 64], sizes = [8, 32], strides = [1, 1]} : vector<8x128xf32> to vector<8x32xf32>
    %245 = arith.mulf %234, %244 : vector<8x32xf32>
    %246 = arith.addf %243, %245 : vector<8x32xf32>
    %247 = math.tanh %246 : vector<8x32xf32>
    %cst_45 = arith.constant 1.000000e+00 : f32
    %248 = vector.broadcast %cst_45 : f32 to vector<8x32xf32>
    %249 = arith.subf %248, %242 : vector<8x32xf32>
    %250 = arith.mulf %249, %247 : vector<8x32xf32>
    %251 = arith.mulf %242, %222 : vector<8x32xf32>
    %252 = arith.addf %250, %251 : vector<8x32xf32>
    %253 = tpu.concatenate %42, %72, %102, %132, %162, %192, %222, %252 in 0 : vector<8x32xf32>, vector<8x32xf32>, vector<8x32xf32>, vector<8x32xf32>, vector<8x32xf32>, vector<8x32xf32>, vector<8x32xf32>, vector<8x32xf32> -> vector<64x32xf32>
    %c1 = arith.constant 1 : index
    %c0_46 = arith.constant 0 : index
    %c0_47 = arith.constant 0 : index
    %254 = vector.load %arg1[%c1, %c0_46, %c0_47] : memref<2x32x128xf32, #tpu.memory_space<vmem>>, vector<1x32x128xf32>
    %255 = vector.shape_cast %254 : vector<1x32x128xf32> to vector<32x128xf32>
    %cst_48 = arith.constant dense<0.000000e+00> : vector<64x128xf32>
    %256 = tpu.matmul %253, %255, %cst_48 {dimension_numbers = #tpu.dot_dimension_numbers<[1], [0], [0], [1], [0, 0, 1, 1], [], []>} : vector<64x32xf32>, vector<32x128xf32>, vector<64x128xf32> -> vector<64x128xf32>
    %c1_49 = arith.constant 1 : index
    %c0_50 = arith.constant 0 : index
    %c0_51 = arith.constant 0 : index
    %257 = vector.load %arg3[%c1_49, %c0_50, %c0_51] : memref<2x1x128xf32, #tpu.memory_space<vmem>>, vector<1x1x128xf32>
    %258 = vector.shape_cast %257 : vector<1x1x128xf32> to vector<1x128xf32>
    %259 = vector.broadcast %258 : vector<1x128xf32> to vector<64x128xf32>
    %260 = arith.addf %256, %259 : vector<64x128xf32>
    %c1_52 = arith.constant 1 : index
    %c0_53 = arith.constant 0 : index
    %c0_54 = arith.constant 0 : index
    %261 = vector.load %arg2[%c1_52, %c0_53, %c0_54] : memref<2x32x128xf32, #tpu.memory_space<vmem>>, vector<1x32x128xf32>
    %262 = vector.shape_cast %261 : vector<1x32x128xf32> to vector<32x128xf32>
    %c1_55 = arith.constant 1 : index
    %c0_56 = arith.constant 0 : index
    %c0_57 = arith.constant 0 : index
    %263 = vector.load %arg4[%c1_55, %c0_56, %c0_57] : memref<2x1x128xf32, #tpu.memory_space<vmem>>, vector<1x1x128xf32>
    %264 = vector.shape_cast %263 : vector<1x1x128xf32> to vector<1x128xf32>
    %cst_58 = arith.constant 0.000000e+00 : f32
    %265 = vector.broadcast %cst_58 : f32 to vector<8x32xf32>
    %cst_59 = arith.constant dense<0.000000e+00> : vector<8x128xf32>
    %266 = tpu.matmul %265, %262, %cst_59 {dimension_numbers = #tpu.dot_dimension_numbers<[1], [0], [0], [1], [0, 0, 1, 1], [], []>} : vector<8x32xf32>, vector<32x128xf32>, vector<8x128xf32> -> vector<8x128xf32>
    %267 = vector.broadcast %264 : vector<1x128xf32> to vector<8x128xf32>
    %268 = arith.addf %266, %267 : vector<8x128xf32>
    %269 = vector.extract_strided_slice %260 {offsets = [0, 0], sizes = [8, 128], strides = [1, 1]} : vector<64x128xf32> to vector<8x128xf32>
    %270 = vector.extract_strided_slice %269 {offsets = [0, 0], sizes = [8, 32], strides = [1, 1]} : vector<8x128xf32> to vector<8x32xf32>
    %271 = vector.extract_strided_slice %268 {offsets = [0, 0], sizes = [8, 32], strides = [1, 1]} : vector<8x128xf32> to vector<8x32xf32>
    %272 = arith.addf %270, %271 : vector<8x32xf32>
    %273 = arith.negf %272 : vector<8x32xf32>
    %274 = math.exp %273 : vector<8x32xf32>
    %cst_60 = arith.constant 1.000000e+00 : f32
    %275 = vector.broadcast %cst_60 : f32 to vector<8x32xf32>
    %276 = arith.addf %275, %274 : vector<8x32xf32>
    %277 = arith.divf %275, %276 : vector<8x32xf32>
    %278 = vector.extract_strided_slice %269 {offsets = [0, 32], sizes = [8, 32], strides = [1, 1]} : vector<8x128xf32> to vector<8x32xf32>
    %279 = vector.extract_strided_slice %268 {offsets = [0, 32], sizes = [8, 32], strides = [1, 1]} : vector<8x128xf32> to vector<8x32xf32>
    %280 = arith.addf %278, %279 : vector<8x32xf32>
    %281 = arith.negf %280 : vector<8x32xf32>
    %282 = math.exp %281 : vector<8x32xf32>
    %cst_61 = arith.constant 1.000000e+00 : f32
    %283 = vector.broadcast %cst_61 : f32 to vector<8x32xf32>
    %284 = arith.addf %283, %282 : vector<8x32xf32>
    %285 = arith.divf %283, %284 : vector<8x32xf32>
    %286 = vector.extract_strided_slice %269 {offsets = [0, 64], sizes = [8, 32], strides = [1, 1]} : vector<8x128xf32> to vector<8x32xf32>
    %287 = vector.extract_strided_slice %268 {offsets = [0, 64], sizes = [8, 32], strides = [1, 1]} : vector<8x128xf32> to vector<8x32xf32>
    %288 = arith.mulf %277, %287 : vector<8x32xf32>
    %289 = arith.addf %286, %288 : vector<8x32xf32>
    %290 = math.tanh %289 : vector<8x32xf32>
    %cst_62 = arith.constant 1.000000e+00 : f32
    %291 = vector.broadcast %cst_62 : f32 to vector<8x32xf32>
    %292 = arith.subf %291, %285 : vector<8x32xf32>
    %293 = arith.mulf %292, %290 : vector<8x32xf32>
    %294 = arith.mulf %285, %265 : vector<8x32xf32>
    %295 = arith.addf %293, %294 : vector<8x32xf32>
    %cst_63 = arith.constant dense<0.000000e+00> : vector<8x128xf32>
    %296 = tpu.matmul %295, %262, %cst_63 {dimension_numbers = #tpu.dot_dimension_numbers<[1], [0], [0], [1], [0, 0, 1, 1], [], []>} : vector<8x32xf32>, vector<32x128xf32>, vector<8x128xf32> -> vector<8x128xf32>
    %297 = vector.broadcast %264 : vector<1x128xf32> to vector<8x128xf32>
    %298 = arith.addf %296, %297 : vector<8x128xf32>
    %299 = vector.extract_strided_slice %260 {offsets = [8, 0], sizes = [8, 128], strides = [1, 1]} : vector<64x128xf32> to vector<8x128xf32>
    %300 = vector.extract_strided_slice %299 {offsets = [0, 0], sizes = [8, 32], strides = [1, 1]} : vector<8x128xf32> to vector<8x32xf32>
    %301 = vector.extract_strided_slice %298 {offsets = [0, 0], sizes = [8, 32], strides = [1, 1]} : vector<8x128xf32> to vector<8x32xf32>
    %302 = arith.addf %300, %301 : vector<8x32xf32>
    %303 = arith.negf %302 : vector<8x32xf32>
    %304 = math.exp %303 : vector<8x32xf32>
    %cst_64 = arith.constant 1.000000e+00 : f32
    %305 = vector.broadcast %cst_64 : f32 to vector<8x32xf32>
    %306 = arith.addf %305, %304 : vector<8x32xf32>
    %307 = arith.divf %305, %306 : vector<8x32xf32>
    %308 = vector.extract_strided_slice %299 {offsets = [0, 32], sizes = [8, 32], strides = [1, 1]} : vector<8x128xf32> to vector<8x32xf32>
    %309 = vector.extract_strided_slice %298 {offsets = [0, 32], sizes = [8, 32], strides = [1, 1]} : vector<8x128xf32> to vector<8x32xf32>
    %310 = arith.addf %308, %309 : vector<8x32xf32>
    %311 = arith.negf %310 : vector<8x32xf32>
    %312 = math.exp %311 : vector<8x32xf32>
    %cst_65 = arith.constant 1.000000e+00 : f32
    %313 = vector.broadcast %cst_65 : f32 to vector<8x32xf32>
    %314 = arith.addf %313, %312 : vector<8x32xf32>
    %315 = arith.divf %313, %314 : vector<8x32xf32>
    %316 = vector.extract_strided_slice %299 {offsets = [0, 64], sizes = [8, 32], strides = [1, 1]} : vector<8x128xf32> to vector<8x32xf32>
    %317 = vector.extract_strided_slice %298 {offsets = [0, 64], sizes = [8, 32], strides = [1, 1]} : vector<8x128xf32> to vector<8x32xf32>
    %318 = arith.mulf %307, %317 : vector<8x32xf32>
    %319 = arith.addf %316, %318 : vector<8x32xf32>
    %320 = math.tanh %319 : vector<8x32xf32>
    %cst_66 = arith.constant 1.000000e+00 : f32
    %321 = vector.broadcast %cst_66 : f32 to vector<8x32xf32>
    %322 = arith.subf %321, %315 : vector<8x32xf32>
    %323 = arith.mulf %322, %320 : vector<8x32xf32>
    %324 = arith.mulf %315, %295 : vector<8x32xf32>
    %325 = arith.addf %323, %324 : vector<8x32xf32>
    %cst_67 = arith.constant dense<0.000000e+00> : vector<8x128xf32>
    %326 = tpu.matmul %325, %262, %cst_67 {dimension_numbers = #tpu.dot_dimension_numbers<[1], [0], [0], [1], [0, 0, 1, 1], [], []>} : vector<8x32xf32>, vector<32x128xf32>, vector<8x128xf32> -> vector<8x128xf32>
    %327 = vector.broadcast %264 : vector<1x128xf32> to vector<8x128xf32>
    %328 = arith.addf %326, %327 : vector<8x128xf32>
    %329 = vector.extract_strided_slice %260 {offsets = [16, 0], sizes = [8, 128], strides = [1, 1]} : vector<64x128xf32> to vector<8x128xf32>
    %330 = vector.extract_strided_slice %329 {offsets = [0, 0], sizes = [8, 32], strides = [1, 1]} : vector<8x128xf32> to vector<8x32xf32>
    %331 = vector.extract_strided_slice %328 {offsets = [0, 0], sizes = [8, 32], strides = [1, 1]} : vector<8x128xf32> to vector<8x32xf32>
    %332 = arith.addf %330, %331 : vector<8x32xf32>
    %333 = arith.negf %332 : vector<8x32xf32>
    %334 = math.exp %333 : vector<8x32xf32>
    %cst_68 = arith.constant 1.000000e+00 : f32
    %335 = vector.broadcast %cst_68 : f32 to vector<8x32xf32>
    %336 = arith.addf %335, %334 : vector<8x32xf32>
    %337 = arith.divf %335, %336 : vector<8x32xf32>
    %338 = vector.extract_strided_slice %329 {offsets = [0, 32], sizes = [8, 32], strides = [1, 1]} : vector<8x128xf32> to vector<8x32xf32>
    %339 = vector.extract_strided_slice %328 {offsets = [0, 32], sizes = [8, 32], strides = [1, 1]} : vector<8x128xf32> to vector<8x32xf32>
    %340 = arith.addf %338, %339 : vector<8x32xf32>
    %341 = arith.negf %340 : vector<8x32xf32>
    %342 = math.exp %341 : vector<8x32xf32>
    %cst_69 = arith.constant 1.000000e+00 : f32
    %343 = vector.broadcast %cst_69 : f32 to vector<8x32xf32>
    %344 = arith.addf %343, %342 : vector<8x32xf32>
    %345 = arith.divf %343, %344 : vector<8x32xf32>
    %346 = vector.extract_strided_slice %329 {offsets = [0, 64], sizes = [8, 32], strides = [1, 1]} : vector<8x128xf32> to vector<8x32xf32>
    %347 = vector.extract_strided_slice %328 {offsets = [0, 64], sizes = [8, 32], strides = [1, 1]} : vector<8x128xf32> to vector<8x32xf32>
    %348 = arith.mulf %337, %347 : vector<8x32xf32>
    %349 = arith.addf %346, %348 : vector<8x32xf32>
    %350 = math.tanh %349 : vector<8x32xf32>
    %cst_70 = arith.constant 1.000000e+00 : f32
    %351 = vector.broadcast %cst_70 : f32 to vector<8x32xf32>
    %352 = arith.subf %351, %345 : vector<8x32xf32>
    %353 = arith.mulf %352, %350 : vector<8x32xf32>
    %354 = arith.mulf %345, %325 : vector<8x32xf32>
    %355 = arith.addf %353, %354 : vector<8x32xf32>
    %cst_71 = arith.constant dense<0.000000e+00> : vector<8x128xf32>
    %356 = tpu.matmul %355, %262, %cst_71 {dimension_numbers = #tpu.dot_dimension_numbers<[1], [0], [0], [1], [0, 0, 1, 1], [], []>} : vector<8x32xf32>, vector<32x128xf32>, vector<8x128xf32> -> vector<8x128xf32>
    %357 = vector.broadcast %264 : vector<1x128xf32> to vector<8x128xf32>
    %358 = arith.addf %356, %357 : vector<8x128xf32>
    %359 = vector.extract_strided_slice %260 {offsets = [24, 0], sizes = [8, 128], strides = [1, 1]} : vector<64x128xf32> to vector<8x128xf32>
    %360 = vector.extract_strided_slice %359 {offsets = [0, 0], sizes = [8, 32], strides = [1, 1]} : vector<8x128xf32> to vector<8x32xf32>
    %361 = vector.extract_strided_slice %358 {offsets = [0, 0], sizes = [8, 32], strides = [1, 1]} : vector<8x128xf32> to vector<8x32xf32>
    %362 = arith.addf %360, %361 : vector<8x32xf32>
    %363 = arith.negf %362 : vector<8x32xf32>
    %364 = math.exp %363 : vector<8x32xf32>
    %cst_72 = arith.constant 1.000000e+00 : f32
    %365 = vector.broadcast %cst_72 : f32 to vector<8x32xf32>
    %366 = arith.addf %365, %364 : vector<8x32xf32>
    %367 = arith.divf %365, %366 : vector<8x32xf32>
    %368 = vector.extract_strided_slice %359 {offsets = [0, 32], sizes = [8, 32], strides = [1, 1]} : vector<8x128xf32> to vector<8x32xf32>
    %369 = vector.extract_strided_slice %358 {offsets = [0, 32], sizes = [8, 32], strides = [1, 1]} : vector<8x128xf32> to vector<8x32xf32>
    %370 = arith.addf %368, %369 : vector<8x32xf32>
    %371 = arith.negf %370 : vector<8x32xf32>
    %372 = math.exp %371 : vector<8x32xf32>
    %cst_73 = arith.constant 1.000000e+00 : f32
    %373 = vector.broadcast %cst_73 : f32 to vector<8x32xf32>
    %374 = arith.addf %373, %372 : vector<8x32xf32>
    %375 = arith.divf %373, %374 : vector<8x32xf32>
    %376 = vector.extract_strided_slice %359 {offsets = [0, 64], sizes = [8, 32], strides = [1, 1]} : vector<8x128xf32> to vector<8x32xf32>
    %377 = vector.extract_strided_slice %358 {offsets = [0, 64], sizes = [8, 32], strides = [1, 1]} : vector<8x128xf32> to vector<8x32xf32>
    %378 = arith.mulf %367, %377 : vector<8x32xf32>
    %379 = arith.addf %376, %378 : vector<8x32xf32>
    %380 = math.tanh %379 : vector<8x32xf32>
    %cst_74 = arith.constant 1.000000e+00 : f32
    %381 = vector.broadcast %cst_74 : f32 to vector<8x32xf32>
    %382 = arith.subf %381, %375 : vector<8x32xf32>
    %383 = arith.mulf %382, %380 : vector<8x32xf32>
    %384 = arith.mulf %375, %355 : vector<8x32xf32>
    %385 = arith.addf %383, %384 : vector<8x32xf32>
    %cst_75 = arith.constant dense<0.000000e+00> : vector<8x128xf32>
    %386 = tpu.matmul %385, %262, %cst_75 {dimension_numbers = #tpu.dot_dimension_numbers<[1], [0], [0], [1], [0, 0, 1, 1], [], []>} : vector<8x32xf32>, vector<32x128xf32>, vector<8x128xf32> -> vector<8x128xf32>
    %387 = vector.broadcast %264 : vector<1x128xf32> to vector<8x128xf32>
    %388 = arith.addf %386, %387 : vector<8x128xf32>
    %389 = vector.extract_strided_slice %260 {offsets = [32, 0], sizes = [8, 128], strides = [1, 1]} : vector<64x128xf32> to vector<8x128xf32>
    %390 = vector.extract_strided_slice %389 {offsets = [0, 0], sizes = [8, 32], strides = [1, 1]} : vector<8x128xf32> to vector<8x32xf32>
    %391 = vector.extract_strided_slice %388 {offsets = [0, 0], sizes = [8, 32], strides = [1, 1]} : vector<8x128xf32> to vector<8x32xf32>
    %392 = arith.addf %390, %391 : vector<8x32xf32>
    %393 = arith.negf %392 : vector<8x32xf32>
    %394 = math.exp %393 : vector<8x32xf32>
    %cst_76 = arith.constant 1.000000e+00 : f32
    %395 = vector.broadcast %cst_76 : f32 to vector<8x32xf32>
    %396 = arith.addf %395, %394 : vector<8x32xf32>
    %397 = arith.divf %395, %396 : vector<8x32xf32>
    %398 = vector.extract_strided_slice %389 {offsets = [0, 32], sizes = [8, 32], strides = [1, 1]} : vector<8x128xf32> to vector<8x32xf32>
    %399 = vector.extract_strided_slice %388 {offsets = [0, 32], sizes = [8, 32], strides = [1, 1]} : vector<8x128xf32> to vector<8x32xf32>
    %400 = arith.addf %398, %399 : vector<8x32xf32>
    %401 = arith.negf %400 : vector<8x32xf32>
    %402 = math.exp %401 : vector<8x32xf32>
    %cst_77 = arith.constant 1.000000e+00 : f32
    %403 = vector.broadcast %cst_77 : f32 to vector<8x32xf32>
    %404 = arith.addf %403, %402 : vector<8x32xf32>
    %405 = arith.divf %403, %404 : vector<8x32xf32>
    %406 = vector.extract_strided_slice %389 {offsets = [0, 64], sizes = [8, 32], strides = [1, 1]} : vector<8x128xf32> to vector<8x32xf32>
    %407 = vector.extract_strided_slice %388 {offsets = [0, 64], sizes = [8, 32], strides = [1, 1]} : vector<8x128xf32> to vector<8x32xf32>
    %408 = arith.mulf %397, %407 : vector<8x32xf32>
    %409 = arith.addf %406, %408 : vector<8x32xf32>
    %410 = math.tanh %409 : vector<8x32xf32>
    %cst_78 = arith.constant 1.000000e+00 : f32
    %411 = vector.broadcast %cst_78 : f32 to vector<8x32xf32>
    %412 = arith.subf %411, %405 : vector<8x32xf32>
    %413 = arith.mulf %412, %410 : vector<8x32xf32>
    %414 = arith.mulf %405, %385 : vector<8x32xf32>
    %415 = arith.addf %413, %414 : vector<8x32xf32>
    %cst_79 = arith.constant dense<0.000000e+00> : vector<8x128xf32>
    %416 = tpu.matmul %415, %262, %cst_79 {dimension_numbers = #tpu.dot_dimension_numbers<[1], [0], [0], [1], [0, 0, 1, 1], [], []>} : vector<8x32xf32>, vector<32x128xf32>, vector<8x128xf32> -> vector<8x128xf32>
    %417 = vector.broadcast %264 : vector<1x128xf32> to vector<8x128xf32>
    %418 = arith.addf %416, %417 : vector<8x128xf32>
    %419 = vector.extract_strided_slice %260 {offsets = [40, 0], sizes = [8, 128], strides = [1, 1]} : vector<64x128xf32> to vector<8x128xf32>
    %420 = vector.extract_strided_slice %419 {offsets = [0, 0], sizes = [8, 32], strides = [1, 1]} : vector<8x128xf32> to vector<8x32xf32>
    %421 = vector.extract_strided_slice %418 {offsets = [0, 0], sizes = [8, 32], strides = [1, 1]} : vector<8x128xf32> to vector<8x32xf32>
    %422 = arith.addf %420, %421 : vector<8x32xf32>
    %423 = arith.negf %422 : vector<8x32xf32>
    %424 = math.exp %423 : vector<8x32xf32>
    %cst_80 = arith.constant 1.000000e+00 : f32
    %425 = vector.broadcast %cst_80 : f32 to vector<8x32xf32>
    %426 = arith.addf %425, %424 : vector<8x32xf32>
    %427 = arith.divf %425, %426 : vector<8x32xf32>
    %428 = vector.extract_strided_slice %419 {offsets = [0, 32], sizes = [8, 32], strides = [1, 1]} : vector<8x128xf32> to vector<8x32xf32>
    %429 = vector.extract_strided_slice %418 {offsets = [0, 32], sizes = [8, 32], strides = [1, 1]} : vector<8x128xf32> to vector<8x32xf32>
    %430 = arith.addf %428, %429 : vector<8x32xf32>
    %431 = arith.negf %430 : vector<8x32xf32>
    %432 = math.exp %431 : vector<8x32xf32>
    %cst_81 = arith.constant 1.000000e+00 : f32
    %433 = vector.broadcast %cst_81 : f32 to vector<8x32xf32>
    %434 = arith.addf %433, %432 : vector<8x32xf32>
    %435 = arith.divf %433, %434 : vector<8x32xf32>
    %436 = vector.extract_strided_slice %419 {offsets = [0, 64], sizes = [8, 32], strides = [1, 1]} : vector<8x128xf32> to vector<8x32xf32>
    %437 = vector.extract_strided_slice %418 {offsets = [0, 64], sizes = [8, 32], strides = [1, 1]} : vector<8x128xf32> to vector<8x32xf32>
    %438 = arith.mulf %427, %437 : vector<8x32xf32>
    %439 = arith.addf %436, %438 : vector<8x32xf32>
    %440 = math.tanh %439 : vector<8x32xf32>
    %cst_82 = arith.constant 1.000000e+00 : f32
    %441 = vector.broadcast %cst_82 : f32 to vector<8x32xf32>
    %442 = arith.subf %441, %435 : vector<8x32xf32>
    %443 = arith.mulf %442, %440 : vector<8x32xf32>
    %444 = arith.mulf %435, %415 : vector<8x32xf32>
    %445 = arith.addf %443, %444 : vector<8x32xf32>
    %cst_83 = arith.constant dense<0.000000e+00> : vector<8x128xf32>
    %446 = tpu.matmul %445, %262, %cst_83 {dimension_numbers = #tpu.dot_dimension_numbers<[1], [0], [0], [1], [0, 0, 1, 1], [], []>} : vector<8x32xf32>, vector<32x128xf32>, vector<8x128xf32> -> vector<8x128xf32>
    %447 = vector.broadcast %264 : vector<1x128xf32> to vector<8x128xf32>
    %448 = arith.addf %446, %447 : vector<8x128xf32>
    %449 = vector.extract_strided_slice %260 {offsets = [48, 0], sizes = [8, 128], strides = [1, 1]} : vector<64x128xf32> to vector<8x128xf32>
    %450 = vector.extract_strided_slice %449 {offsets = [0, 0], sizes = [8, 32], strides = [1, 1]} : vector<8x128xf32> to vector<8x32xf32>
    %451 = vector.extract_strided_slice %448 {offsets = [0, 0], sizes = [8, 32], strides = [1, 1]} : vector<8x128xf32> to vector<8x32xf32>
    %452 = arith.addf %450, %451 : vector<8x32xf32>
    %453 = arith.negf %452 : vector<8x32xf32>
    %454 = math.exp %453 : vector<8x32xf32>
    %cst_84 = arith.constant 1.000000e+00 : f32
    %455 = vector.broadcast %cst_84 : f32 to vector<8x32xf32>
    %456 = arith.addf %455, %454 : vector<8x32xf32>
    %457 = arith.divf %455, %456 : vector<8x32xf32>
    %458 = vector.extract_strided_slice %449 {offsets = [0, 32], sizes = [8, 32], strides = [1, 1]} : vector<8x128xf32> to vector<8x32xf32>
    %459 = vector.extract_strided_slice %448 {offsets = [0, 32], sizes = [8, 32], strides = [1, 1]} : vector<8x128xf32> to vector<8x32xf32>
    %460 = arith.addf %458, %459 : vector<8x32xf32>
    %461 = arith.negf %460 : vector<8x32xf32>
    %462 = math.exp %461 : vector<8x32xf32>
    %cst_85 = arith.constant 1.000000e+00 : f32
    %463 = vector.broadcast %cst_85 : f32 to vector<8x32xf32>
    %464 = arith.addf %463, %462 : vector<8x32xf32>
    %465 = arith.divf %463, %464 : vector<8x32xf32>
    %466 = vector.extract_strided_slice %449 {offsets = [0, 64], sizes = [8, 32], strides = [1, 1]} : vector<8x128xf32> to vector<8x32xf32>
    %467 = vector.extract_strided_slice %448 {offsets = [0, 64], sizes = [8, 32], strides = [1, 1]} : vector<8x128xf32> to vector<8x32xf32>
    %468 = arith.mulf %457, %467 : vector<8x32xf32>
    %469 = arith.addf %466, %468 : vector<8x32xf32>
    %470 = math.tanh %469 : vector<8x32xf32>
    %cst_86 = arith.constant 1.000000e+00 : f32
    %471 = vector.broadcast %cst_86 : f32 to vector<8x32xf32>
    %472 = arith.subf %471, %465 : vector<8x32xf32>
    %473 = arith.mulf %472, %470 : vector<8x32xf32>
    %474 = arith.mulf %465, %445 : vector<8x32xf32>
    %475 = arith.addf %473, %474 : vector<8x32xf32>
    %cst_87 = arith.constant dense<0.000000e+00> : vector<8x128xf32>
    %476 = tpu.matmul %475, %262, %cst_87 {dimension_numbers = #tpu.dot_dimension_numbers<[1], [0], [0], [1], [0, 0, 1, 1], [], []>} : vector<8x32xf32>, vector<32x128xf32>, vector<8x128xf32> -> vector<8x128xf32>
    %477 = vector.broadcast %264 : vector<1x128xf32> to vector<8x128xf32>
    %478 = arith.addf %476, %477 : vector<8x128xf32>
    %479 = vector.extract_strided_slice %260 {offsets = [56, 0], sizes = [8, 128], strides = [1, 1]} : vector<64x128xf32> to vector<8x128xf32>
    %480 = vector.extract_strided_slice %479 {offsets = [0, 0], sizes = [8, 32], strides = [1, 1]} : vector<8x128xf32> to vector<8x32xf32>
    %481 = vector.extract_strided_slice %478 {offsets = [0, 0], sizes = [8, 32], strides = [1, 1]} : vector<8x128xf32> to vector<8x32xf32>
    %482 = arith.addf %480, %481 : vector<8x32xf32>
    %483 = arith.negf %482 : vector<8x32xf32>
    %484 = math.exp %483 : vector<8x32xf32>
    %cst_88 = arith.constant 1.000000e+00 : f32
    %485 = vector.broadcast %cst_88 : f32 to vector<8x32xf32>
    %486 = arith.addf %485, %484 : vector<8x32xf32>
    %487 = arith.divf %485, %486 : vector<8x32xf32>
    %488 = vector.extract_strided_slice %479 {offsets = [0, 32], sizes = [8, 32], strides = [1, 1]} : vector<8x128xf32> to vector<8x32xf32>
    %489 = vector.extract_strided_slice %478 {offsets = [0, 32], sizes = [8, 32], strides = [1, 1]} : vector<8x128xf32> to vector<8x32xf32>
    %490 = arith.addf %488, %489 : vector<8x32xf32>
    %491 = arith.negf %490 : vector<8x32xf32>
    %492 = math.exp %491 : vector<8x32xf32>
    %cst_89 = arith.constant 1.000000e+00 : f32
    %493 = vector.broadcast %cst_89 : f32 to vector<8x32xf32>
    %494 = arith.addf %493, %492 : vector<8x32xf32>
    %495 = arith.divf %493, %494 : vector<8x32xf32>
    %496 = vector.extract_strided_slice %479 {offsets = [0, 64], sizes = [8, 32], strides = [1, 1]} : vector<8x128xf32> to vector<8x32xf32>
    %497 = vector.extract_strided_slice %478 {offsets = [0, 64], sizes = [8, 32], strides = [1, 1]} : vector<8x128xf32> to vector<8x32xf32>
    %498 = arith.mulf %487, %497 : vector<8x32xf32>
    %499 = arith.addf %496, %498 : vector<8x32xf32>
    %500 = math.tanh %499 : vector<8x32xf32>
    %cst_90 = arith.constant 1.000000e+00 : f32
    %501 = vector.broadcast %cst_90 : f32 to vector<8x32xf32>
    %502 = arith.subf %501, %495 : vector<8x32xf32>
    %503 = arith.mulf %502, %500 : vector<8x32xf32>
    %504 = arith.mulf %495, %475 : vector<8x32xf32>
    %505 = arith.addf %503, %504 : vector<8x32xf32>
    %c0_91 = arith.constant 0 : index
    %c0_92 = arith.constant 0 : index
    %506 = vector.load %arg5[%c0_91, %c0_92] : memref<32x32xf32, #tpu.memory_space<vmem>>, vector<32x32xf32>
    %cst_93 = arith.constant dense<0.000000e+00> : vector<8x32xf32>
    %507 = tpu.matmul %505, %506, %cst_93 {dimension_numbers = #tpu.dot_dimension_numbers<[1], [0], [0], [1], [0, 0, 1, 1], [], []>} : vector<8x32xf32>, vector<32x32xf32>, vector<8x32xf32> -> vector<8x32xf32>
    %c0_94 = arith.constant 0 : index
    %c0_95 = arith.constant 0 : index
    %508 = vector.load %arg6[%c0_94, %c0_95] : memref<1x32xf32, #tpu.memory_space<vmem>>, vector<1x32xf32>
    %509 = vector.broadcast %508 : vector<1x32xf32> to vector<8x32xf32>
    %510 = arith.addf %507, %509 : vector<8x32xf32>
    %cst_96 = arith.constant 0.000000e+00 : f32
    %511 = vector.broadcast %cst_96 : f32 to vector<8x32xf32>
    %512 = arith.maximumf %510, %511 : vector<8x32xf32>
    %c0_97 = arith.constant 0 : index
    %c0_98 = arith.constant 0 : index
    %513 = vector.load %arg7[%c0_97, %c0_98] : memref<32x4xf32, #tpu.memory_space<vmem>>, vector<32x4xf32>
    %cst_99 = arith.constant dense<0.000000e+00> : vector<8x4xf32>
    %514 = tpu.matmul %512, %513, %cst_99 {dimension_numbers = #tpu.dot_dimension_numbers<[1], [0], [0], [1], [0, 0, 1, 1], [], []>} : vector<8x32xf32>, vector<32x4xf32>, vector<8x4xf32> -> vector<8x4xf32>
    %c0_100 = arith.constant 0 : index
    %c0_101 = arith.constant 0 : index
    %515 = vector.load %arg8[%c0_100, %c0_101] : memref<1x4xf32, #tpu.memory_space<vmem>>, vector<1x4xf32>
    %516 = vector.broadcast %515 : vector<1x4xf32> to vector<8x4xf32>
    %517 = arith.addf %514, %516 : vector<8x4xf32>
    %c0_102 = arith.constant 0 : index
    %c0_103 = arith.constant 0 : index
    %518 = vector.load %arg9[%c0_102, %c0_103] : memref<8x4xf32, #tpu.memory_space<vmem>>, vector<8x4xf32>
    tpu.vector_store %arg9[%c0_102, %c0_103], %517 {strides = array<i32>} : memref<8x4xf32, #tpu.memory_space<vmem>>, vector<8x4xf32>,
    return
  }
}

</mosaic_0001>

<llo_original>
// kernel: grumodel_forward.1
$region0: #{grumodel_forward.1}
  #allocation0 [shape = 'u32[]', space=smem, size = 0x4, offset = 0x4, fixed_abs, tag = 'smem constant byte address 0x4 - core index']
  #allocation1 [shape = 'u32[144,128]{1,0:T(1,128)}', space=vmem, size = 0x12000, scoped, tag = 'internal scratch']
  %s0 = inlined_call_operand.vmem [shape: f32[64,32], index: 0, kind: input, shape index: {}]
  %s1 = inlined_call_operand.vmem [shape: f32[2,32,128], index: 1, kind: input, shape index: {}]
  %s2 = inlined_call_operand.vmem [shape: f32[2,32,128], index: 2, kind: input, shape index: {}]
  %s3 = inlined_call_operand.vmem [shape: f32[2,1,128], index: 3, kind: input, shape index: {}]
  %s4 = inlined_call_operand.vmem [shape: f32[2,1,128], index: 4, kind: input, shape index: {}]
  %s5 = inlined_call_operand.hbm [shape: f32[32,32], index: 5, kind: input, shape index: {}]
  %s6 = inlined_call_operand.vmem [shape: f32[1,32], index: 6, kind: input, shape index: {}]
  %s7 = inlined_call_operand.vmem [shape: f32[32,4], index: 7, kind: input, shape index: {}]
  %s8 = inlined_call_operand.vmem [shape: f32[1,4], index: 8, kind: input, shape index: {}]
  %s9 = inlined_call_operand.vmem [shape: f32[8,4], index: 9, kind: output, shape index: {}]
  %s10 = sld [smem:[#allocation0]]
  $region50: #{grumodel_forward.1} parent=0
    _
  %s12 = ssub.s32 1, %s10
  %s13 = scalar_select 0, %s12, %s10
  $region1: #{grumodel_forward.1} parent=0
    #allocation2 [shape = 'u8[16384]{0}', space=vmem, size = 0x4000, scoped, tag = 'input window, operand 5, single buffered']
    #allocation3 [shape = 's32[1]{0}', space=sflag, size = 0x4, scoped, tag = 'scoped memory for grumodel_forward.1']
    %14 = vsyncpa [#allocation3], 0
    // Predicated region
    $region2: #{grumodel_forward.1} parent=1 // pred_check
      _
    $region3: #{grumodel_forward.1} parent=1 // pred_check_branch
      %16 = sbr.rel (0) target = $region5
    $region4: #{grumodel_forward.1} parent=1 // pred_region
      _
    $region5: #{grumodel_forward.1} parent=1 // pred_fallthru
      _
    // Predicated region
    $region6: #{grumodel_forward.1} parent=1 // pred_check
      _
    $region7: #{grumodel_forward.1} parent=1 // pred_check_branch
      %18 = sbr.rel (0) target = $region9
    $region8: #{grumodel_forward.1} parent=1 // pred_region
      _
    $region9: #{grumodel_forward.1} parent=1 // pred_fallthru
      _
    // Predicated region
    $region10: #{grumodel_forward.1} parent=1 // pred_check
      _
    $region11: #{grumodel_forward.1} parent=1 // pred_check_branch
      %20 = sbr.rel (0) target = $region13
    $region12: #{grumodel_forward.1} parent=1 // pred_region
      _
    $region13: #{grumodel_forward.1} parent=1 // pred_fallthru
      _
    // Predicated region
    $region14: #{grumodel_forward.1} parent=1 // pred_check
      _
    $region15: #{grumodel_forward.1} parent=1 // pred_check_branch
      %22 = sbr.rel (0) target = $region17
    $region16: #{grumodel_forward.1} parent=1 // pred_region
      _
    $region17: #{grumodel_forward.1} parent=1 // pred_fallthru
      _
    // Predicated region
    $region18: #{grumodel_forward.1} parent=1 // pred_check
      _
    $region19: #{grumodel_forward.1} parent=1 // pred_check_branch
      %24 = sbr.rel (0) target = $region21
    $region20: #{grumodel_forward.1} parent=1 // pred_region
      _
    $region21: #{grumodel_forward.1} parent=1 // pred_fallthru
      _
    // Predicated region
    $region22: #{grumodel_forward.1} parent=1 // pred_check
      _
    $region23: #{grumodel_forward.1} parent=1 // pred_check_branch
      %26 = sbr.rel (0) target = $region25
    $region24: #{grumodel_forward.1} parent=1 // pred_region
      %s28 = ssub.s32 512, 512
      %29 = vsyncadd [#allocation3], %s28
      %s30 = sshll.u32 [#allocation2], 4
      %s31 = int_to_ptr.vmem [resolvable:$true] %s30
      %36 = dma.hbm_to_vmem [thread:$0]  %s5, 512, %s31, [#allocation3], 128, 128, 8
    $region25: #{grumodel_forward.1} parent=1 // pred_fallthru
      _
    // Predicated region
    $region26: #{grumodel_forward.1} parent=1 // pred_check
      _
    $region27: #{grumodel_forward.1} parent=1 // pred_check_branch
      %38 = sbr.rel (0) target = $region29
    $region28: #{grumodel_forward.1} parent=1 // pred_region
      _
    $region29: #{grumodel_forward.1} parent=1 // pred_fallthru
      _
    // Predicated region
    $region30: #{grumodel_forward.1} parent=1 // pred_check
      _
    $region31: #{grumodel_forward.1} parent=1 // pred_check_branch
      %40 = sbr.rel (0) target = $region33
    $region32: #{grumodel_forward.1} parent=1 // pred_region
      _
    $region33: #{grumodel_forward.1} parent=1 // pred_fallthru
      _
    // Predicated region
    $region34: #{grumodel_forward.1} parent=1 // pred_check
      _
    $region35: #{grumodel_forward.1} parent=1 // pred_check_branch
      %42 = sbr.rel (0) target = $region37
    $region36: #{grumodel_forward.1} parent=1 // pred_region
      _
    $region37: #{grumodel_forward.1} parent=1 // pred_fallthru
      _
    // Predicated region
    $region38: #{grumodel_forward.1} parent=1 // pred_check
      _
    $region39: #{grumodel_forward.1} parent=1 // pred_check_branch
      %44 = sbr.rel (0) target = $region41
    $region40: #{grumodel_forward.1} parent=1 // pred_region
      %45 = dma.done [#allocation3], 512
    $region41: #{grumodel_forward.1} parent=1 // pred_fallthru
      _
    %v46 = vld [vmem:[%s0] sm:$0xff]
    %v47 = vld [vmem:[%s0 + $0x8] sm:$0xff]
    %v48 = vld [vmem:[%s0 + $0x10] sm:$0xff]
    %v49 = vld [vmem:[%s0 + $0x18] sm:$0xff]
    %v50 = vld [vmem:[%s0 + $0x20] sm:$0xff]
    %v51 = vld [vmem:[%s0 + $0x28] sm:$0xff]
    %v52 = vld [vmem:[%s0 + $0x30] sm:$0xff]
    %v53 = vld [vmem:[%s0 + $0x38] sm:$0xff]
    %v54 = vld [vmem:[%s1] sm:$0xff]
    %v55 = vld [vmem:[%s1 + $0x8] sm:$0xff]
    %v56 = vld [vmem:[%s1 + $0x10] sm:$0xff]
    %v57 = vld [vmem:[%s1 + $0x18] sm:$0xff]
    %v58 = vld [vmem:[%s3] sm:$0x1]
    %v60 = vlaneseq
    %v61 = vshrl.u32 %v60, 7
    %v62 = vsub.s32 0, %v61
    %v63 = vrot.slane %v58, %v62
    %vm65 = vcmask 261120
    %v67 = vsel %vm65, %v46, 0
    %v70 = vsel %vm65, %v47, 0
    %v73 = vsel %vm65, %v48, 0
    %v76 = vsel %vm65, %v49, 0
    %v79 = vsel %vm65, %v50, 0
    %v82 = vsel %vm65, %v51, 0
    %v85 = vsel %vm65, %v52, 0
    %v88 = vsel %vm65, %v53, 0
    %90 = vmatprep.subr.mxu0 0.0
    %91 = vmatpush1.msra.mxu0 0.0
    %92 = vmatprep.subr.mxu0 0.0
    %93 = vmatpush1.msra.mxu0 0.0
    %94 = vmatprep.subr.mxu0 0.0
    %95 = vmatpush1.msra.mxu0 0.0
    %96 = vmatprep.subr.mxu0 0.0
    %97 = vmatpush1.msra.mxu0 0.0
    %98 = vmatprep.subr.mxu0 0.0
    %99 = vmatpush1.msra.mxu0 0.0
    %100 = vmatprep.subr.mxu0 0.0
    %101 = vmatpush1.msra.mxu0 0.0
    %102 = vmatprep.subr.mxu0 0.0
    %103 = vmatpush1.msra.mxu0 0.0
    %104 = vmatprep.subr.mxu0 0.0
    %105 = vmatpush1.msra.mxu0 0.0
    %106 = vmatprep.subr.mxu0 0.0
    %107 = vmatpush1.msra.mxu0 0.0
    %108 = vmatprep.subr.mxu0 0.0
    %109 = vmatpush1.msra.mxu0 0.0
    %110 = vmatprep.subr.mxu0 0.0
    %111 = vmatpush1.msra.mxu0 0.0
    %112 = vmatprep.subr.mxu0 0.0
    %113 = vmatpush1.msra.mxu0 0.0
    %114 = vmatprep.subr.mxu0 0.0
    %115 = vmatpush1.msra.mxu0 %v57
    %116 = vmatprep.subr.mxu0 0.0
    %117 = vmatpush1.msra.mxu0 %v56
    %118 = vmatprep.subr.mxu0 0.0
    %119 = vmatpush1.msra.mxu0 %v55
    %120 = vmatprep.subr.mxu0 0.0
    %121 = vmatpush1.msra.mxu0 %v54
    %122 = vmatprep.subr.mxu0 0.0
    %123 = vmatpush2.msra.mxu0 0.0
    %124 = vmatprep.subr.mxu0 0.0
    %125 = vmatpush2.msra.mxu0 0.0
    %126 = vmatprep.subr.mxu0 0.0
    %127 = vmatpush2.msra.mxu0 0.0
    %128 = vmatprep.subr.mxu0 0.0
    %129 = vmatpush2.msra.mxu0 0.0
    %130 = vmatprep.subr.mxu0 0.0
    %131 = vmatpush2.msra.mxu0 0.0
    %132 = vmatprep.subr.mxu0 0.0
    %133 = vmatpush2.msra.mxu0 0.0
    %134 = vmatprep.subr.mxu0 0.0
    %135 = vmatpush2.msra.mxu0 0.0
    %136 = vmatprep.subr.mxu0 0.0
    %137 = vmatpush2.msra.mxu0 0.0
    %138 = vmatprep.subr.mxu0 0.0
    %139 = vmatpush2.msra.mxu0 0.0
    %140 = vmatprep.subr.mxu0 0.0
    %141 = vmatpush2.msra.mxu0 0.0
    %142 = vmatprep.subr.mxu0 0.0
    %143 = vmatpush2.msra.mxu0 0.0
    %144 = vmatprep.subr.mxu0 0.0
    %145 = vmatpush2.msra.mxu0 0.0
    %146 = vmatprep.subr.mxu0 0.0
    %147 = vmatpush2.msra.mxu0 0.0
    %148 = vmatprep.subr.mxu0 0.0
    %149 = vmatpush2.msra.mxu0 0.0
    %150 = vmatprep.subr.mxu0 0.0
    %151 = vmatpush2.msra.mxu0 0.0
    %152 = vmatprep.subr.mxu0 0.0
    %153 = vmatpush2.msra.mxu0 0.0
    %154 = vmatprep.mubr.f32.mxu0 0.0
    %155 = vmatmul.mubr.f32.gmra.mxu0 %v67
    %v156 = vpop.f32.mrf.mxu0
    %v157 = vadd.f32 %v63, %v156
    %v158 = vpop.f32.mrf.mxu0
    %159 = vmatprep.mubr.f32.mxu0 0.0
    %160 = vmatmul.mubr.f32.gmra.mxu0 %v70
    %v161 = vpop.f32.mrf.mxu0
    %v162 = vadd.f32 %v63, %v161
    %v163 = vpop.f32.mrf.mxu0
    %164 = vmatprep.mubr.f32.mxu0 0.0
    %165 = vmatmul.mubr.f32.gmra.mxu0 %v73
    %v166 = vpop.f32.mrf.mxu0
    %v167 = vadd.f32 %v63, %v166
    %v168 = vpop.f32.mrf.mxu0
    %169 = vmatprep.mubr.f32.mxu0 0.0
    %170 = vmatmul.mubr.f32.gmra.mxu0 %v76
    %v171 = vpop.f32.mrf.mxu0
    %v172 = vadd.f32 %v63, %v171
    %v173 = vpop.f32.mrf.mxu0
    %174 = vmatprep.mubr.f32.mxu0 0.0
    %175 = vmatmul.mubr.f32.gmra.mxu0 %v79
    %v176 = vpop.f32.mrf.mxu0
    %v177 = vadd.f32 %v63, %v176
    %v178 = vpop.f32.mrf.mxu0
    %179 = vmatprep.mubr.f32.mxu0 0.0
    %180 = vmatmul.mubr.f32.gmra.mxu0 %v82
    %v181 = vpop.f32.mrf.mxu0
    %v182 = vadd.f32 %v63, %v181
    %v183 = vpop.f32.mrf.mxu0
    %184 = vmatprep.mubr.f32.mxu0 0.0
    %185 = vmatmul.mubr.f32.gmra.mxu0 %v85
    %v186 = vpop.f32.mrf.mxu0
    %v187 = vadd.f32 %v63, %v186
    %v188 = vpop.f32.mrf.mxu0
    %189 = vmatprep.mubr.f32.mxu0 0.0
    %190 = vmatmul.mubr.f32.gmra.mxu0 %v88
    %v191 = vpop.f32.mrf.mxu0
    %v192 = vadd.f32 %v63, %v191
    %v193 = vpop.f32.mrf.mxu0
    %194 = vdwg.mxu0
    %v195 = vld [vmem:[%s2] sm:$0xff]
    %v196 = vld [vmem:[%s2 + $0x8] sm:$0xff]
    %v197 = vld [vmem:[%s2 + $0x10] sm:$0xff]
    %v198 = vld [vmem:[%s2 + $0x18] sm:$0xff]
    %v199 = vld [vmem:[%s4] sm:$0x1]
    %v201 = vlaneseq
    %v202 = vshrl.u32 %v201, 7
    %v203 = vsub.s32 0, %v202
    %v204 = vrot.slane %v199, %v203
    %v207 = vsel %vm65, 0.0, 0
    %209 = vmatprep.subr.mxu0 0.0
    %210 = vmatpush1.msra.mxu0 0.0
    %211 = vmatprep.subr.mxu0 0.0
    %212 = vmatpush1.msra.mxu0 0.0
    %213 = vmatprep.subr.mxu0 0.0
    %214 = vmatpush1.msra.mxu0 0.0
    %215 = vmatprep.subr.mxu0 0.0
    %216 = vmatpush1.msra.mxu0 0.0
    %217 = vmatprep.subr.mxu0 0.0
    %218 = vmatpush1.msra.mxu0 0.0
    %219 = vmatprep.subr.mxu0 0.0
    %220 = vmatpush1.msra.mxu0 0.0
    %221 = vmatprep.subr.mxu0 0.0
    %222 = vmatpush1.msra.mxu0 0.0
    %223 = vmatprep.subr.mxu0 0.0
    %224 = vmatpush1.msra.mxu0 0.0
    %225 = vmatprep.subr.mxu0 0.0
    %226 = vmatpush1.msra.mxu0 0.0
    %227 = vmatprep.subr.mxu0 0.0
    %228 = vmatpush1.msra.mxu0 0.0
    %229 = vmatprep.subr.mxu0 0.0
    %230 = vmatpush1.msra.mxu0 0.0
    %231 = vmatprep.subr.mxu0 0.0
    %232 = vmatpush1.msra.mxu0 0.0
    %233 = vmatprep.subr.mxu0 0.0
    %234 = vmatpush1.msra.mxu0 %v198
    %235 = vmatprep.subr.mxu0 0.0
    %236 = vmatpush1.msra.mxu0 %v197
    %237 = vmatprep.subr.mxu0 0.0
    %238 = vmatpush1.msra.mxu0 %v196
    %239 = vmatprep.subr.mxu0 0.0
    %240 = vmatpush1.msra.mxu0 %v195
    %241 = vmatprep.subr.mxu0 0.0
    %242 = vmatpush2.msra.mxu0 0.0
    %243 = vmatprep.subr.mxu0 0.0
    %244 = vmatpush2.msra.mxu0 0.0
    %245 = vmatprep.subr.mxu0 0.0
    %246 = vmatpush2.msra.mxu0 0.0
    %247 = vmatprep.subr.mxu0 0.0
    %248 = vmatpush2.msra.mxu0 0.0
    %249 = vmatprep.subr.mxu0 0.0
    %250 = vmatpush2.msra.mxu0 0.0
    %251 = vmatprep.subr.mxu0 0.0
    %252 = vmatpush2.msra.mxu0 0.0
    %253 = vmatprep.subr.mxu0 0.0
    %254 = vmatpush2.msra.mxu0 0.0
    %255 = vmatprep.subr.mxu0 0.0
    %256 = vmatpush2.msra.mxu0 0.0
    %257 = vmatprep.subr.mxu0 0.0
    %258 = vmatpush2.msra.mxu0 0.0
    %259 = vmatprep.subr.mxu0 0.0
    %260 = vmatpush2.msra.mxu0 0.0
    %261 = vmatprep.subr.mxu0 0.0
    %262 = vmatpush2.msra.mxu0 0.0
    %263 = vmatprep.subr.mxu0 0.0
    %264 = vmatpush2.msra.mxu0 0.0
    %265 = vmatprep.subr.mxu0 0.0
    %266 = vmatpush2.msra.mxu0 0.0
    %267 = vmatprep.subr.mxu0 0.0
    %268 = vmatpush2.msra.mxu0 0.0
    %269 = vmatprep.subr.mxu0 0.0
    %270 = vmatpush2.msra.mxu0 0.0
    %271 = vmatprep.subr.mxu0 0.0
    %272 = vmatpush2.msra.mxu0 0.0
    %273 = vmatprep.mubr.f32.mxu0 0.0
    %274 = vmatmul.mubr.f32.gmra.mxu0 %v207
    %v275 = vpop.f32.mrf.mxu0
    %v276 = vadd.f32 %v204, %v275
    %v277 = vpop.f32.mrf.mxu0
    %278 = vdwg.mxu0
    %v279 = vadd.f32 %v157, %v276
    %v280 = vxor.u32 %v279, 2147483648
    %v281 = vmul.f32 %v280, 1.442695
    %v282 = vpow.pop %v281
    %v283 = vadd.f32 %v282, 1.0
    %v284 = vrcp.pop %v283
    %v285 = vmul.f32 1.0, %v284
    %287 = vrot.lane.b32.xlu0 %v276, 64
    %v288 = vpop.permute.xlu0 %287
    %v290 = vmul.f32 %v285, %v288
    %292 = vrot.lane.b32.xlu0 %v290, 64
    %v293 = vpop.permute.xlu0 %292
    %v295 = vadd.f32 %v157, %v293
    %v296 = vtanh.pop %v295
    %v297 = vsub.f32 1.0, %v285
    %299 = vrot.lane.b32.xlu0 %v296, 96
    %v300 = vpop.permute.xlu0 %299
    %v302 = vmul.f32 %v297, %v300
    %v303 = vmul.f32 %v285, 0.0
    %v304 = vadd.f32 %v302, %v303
    %306 = vrot.lane.b32.xlu0 %v304, 96
    %v307 = vpop.permute.xlu0 %306
    %v308 = vsel %vm65, %v307, 0
    %310 = vmatprep.subr.mxu0 0.0
    %311 = vmatpush1.msra.mxu0 0.0
    %312 = vmatprep.subr.mxu0 0.0
    %313 = vmatpush1.msra.mxu0 0.0
    %314 = vmatprep.subr.mxu0 0.0
    %315 = vmatpush1.msra.mxu0 0.0
    %316 = vmatprep.subr.mxu0 0.0
    %317 = vmatpush1.msra.mxu0 0.0
    %318 = vmatprep.subr.mxu0 0.0
    %319 = vmatpush1.msra.mxu0 0.0
    %320 = vmatprep.subr.mxu0 0.0
    %321 = vmatpush1.msra.mxu0 0.0
    %322 = vmatprep.subr.mxu0 0.0
    %323 = vmatpush1.msra.mxu0 0.0
    %324 = vmatprep.subr.mxu0 0.0
    %325 = vmatpush1.msra.mxu0 0.0
    %326 = vmatprep.subr.mxu0 0.0
    %327 = vmatpush1.msra.mxu0 0.0
    %328 = vmatprep.subr.mxu0 0.0
    %329 = vmatpush1.msra.mxu0 0.0
    %330 = vmatprep.subr.mxu0 0.0
    %331 = vmatpush1.msra.mxu0 0.0
    %332 = vmatprep.subr.mxu0 0.0
    %333 = vmatpush1.msra.mxu0 0.0
    %334 = vmatprep.subr.mxu0 0.0
    %335 = vmatpush1.msra.mxu0 %v198
    %336 = vmatprep.subr.mxu0 0.0
    %337 = vmatpush1.msra.mxu0 %v197
    %338 = vmatprep.subr.mxu0 0.0
    %339 = vmatpush1.msra.mxu0 %v196
    %340 = vmatprep.subr.mxu0 0.0
    %341 = vmatpush1.msra.mxu0 %v195
    %342 = vmatprep.subr.mxu0 0.0
    %343 = vmatpush2.msra.mxu0 0.0
    %344 = vmatprep.subr.mxu0 0.0
    %345 = vmatpush2.msra.mxu0 0.0
    %346 = vmatprep.subr.mxu0 0.0
    %347 = vmatpush2.msra.mxu0 0.0
    %348 = vmatprep.subr.mxu0 0.0
    %349 = vmatpush2.msra.mxu0 0.0
    %350 = vmatprep.subr.mxu0 0.0
    %351 = vmatpush2.msra.mxu0 0.0
    %352 = vmatprep.subr.mxu0 0.0
    %353 = vmatpush2.msra.mxu0 0.0
    %354 = vmatprep.subr.mxu0 0.0
    %355 = vmatpush2.msra.mxu0 0.0
    %356 = vmatprep.subr.mxu0 0.0
    %357 = vmatpush2.msra.mxu0 0.0
    %358 = vmatprep.subr.mxu0 0.0
    %359 = vmatpush2.msra.mxu0 0.0
    %360 = vmatprep.subr.mxu0 0.0
    %361 = vmatpush2.msra.mxu0 0.0
    %362 = vmatprep.subr.mxu0 0.0
    %363 = vmatpush2.msra.mxu0 0.0
    %364 = vmatprep.subr.mxu0 0.0
    %365 = vmatpush2.msra.mxu0 0.0
    %366 = vmatprep.subr.mxu0 0.0
    %367 = vmatpush2.msra.mxu0 0.0
    %368 = vmatprep.subr.mxu0 0.0
    %369 = vmatpush2.msra.mxu0 0.0
    %370 = vmatprep.subr.mxu0 0.0
    %371 = vmatpush2.msra.mxu0 0.0
    %372 = vmatprep.subr.mxu0 0.0
    %373 = vmatpush2.msra.mxu0 0.0
    %374 = vmatprep.mubr.f32.mxu0 0.0
    %375 = vmatmul.mubr.f32.gmra.mxu0 %v308
    %v376 = vpop.f32.mrf.mxu0
    %v377 = vadd.f32 %v204, %v376
    %v378 = vpop.f32.mrf.mxu0
    %379 = vdwg.mxu0
    %v380 = vadd.f32 %v162, %v377
    %v381 = vxor.u32 %v380, 2147483648
    %v382 = vmul.f32 %v381, 1.442695
    %v383 = vpow.pop %v382
    %v384 = vadd.f32 %v383, 1.0
    %v385 = vrcp.pop %v384
    %v386 = vmul.f32 1.0, %v385
    %388 = vrot.lane.b32.xlu0 %v377, 64
    %v389 = vpop.permute.xlu0 %388
    %v391 = vmul.f32 %v386, %v389
    %393 = vrot.lane.b32.xlu0 %v391, 64
    %v394 = vpop.permute.xlu0 %393
    %v396 = vadd.f32 %v162, %v394
    %v397 = vtanh.pop %v396
    %v398 = vsub.f32 1.0, %v386
    %400 = vrot.lane.b32.xlu0 %v397, 96
    %v401 = vpop.permute.xlu0 %400
    %v403 = vmul.f32 %v398, %v401
    %v404 = vmul.f32 %v386, %v304
    %v405 = vadd.f32 %v403, %v404
    %407 = vrot.lane.b32.xlu0 %v405, 96
    %v408 = vpop.permute.xlu0 %407
    %v409 = vsel %vm65, %v408, 0
    %411 = vmatprep.subr.mxu0 0.0
    %412 = vmatpush1.msra.mxu0 0.0
    %413 = vmatprep.subr.mxu0 0.0
    %414 = vmatpush1.msra.mxu0 0.0
    %415 = vmatprep.subr.mxu0 0.0
    %416 = vmatpush1.msra.mxu0 0.0
    %417 = vmatprep.subr.mxu0 0.0
    %418 = vmatpush1.msra.mxu0 0.0
    %419 = vmatprep.subr.mxu0 0.0
    %420 = vmatpush1.msra.mxu0 0.0
    %421 = vmatprep.subr.mxu0 0.0
    %422 = vmatpush1.msra.mxu0 0.0
    %423 = vmatprep.subr.mxu0 0.0
    %424 = vmatpush1.msra.mxu0 0.0
    %425 = vmatprep.subr.mxu0 0.0
    %426 = vmatpush1.msra.mxu0 0.0
    %427 = vmatprep.subr.mxu0 0.0
    %428 = vmatpush1.msra.mxu0 0.0
    %429 = vmatprep.subr.mxu0 0.0
    %430 = vmatpush1.msra.mxu0 0.0
    %431 = vmatprep.subr.mxu0 0.0
    %432 = vmatpush1.msra.mxu0 0.0
    %433 = vmatprep.subr.mxu0 0.0
    %434 = vmatpush1.msra.mxu0 0.0
    %435 = vmatprep.subr.mxu0 0.0
    %436 = vmatpush1.msra.mxu0 %v198
    %437 = vmatprep.subr.mxu0 0.0
    %438 = vmatpush1.msra.mxu0 %v197
    %439 = vmatprep.subr.mxu0 0.0
    %440 = vmatpush1.msra.mxu0 %v196
    %441 = vmatprep.subr.mxu0 0.0
    %442 = vmatpush1.msra.mxu0 %v195
    %443 = vmatprep.subr.mxu0 0.0
    %444 = vmatpush2.msra.mxu0 0.0
    %445 = vmatprep.subr.mxu0 0.0
    %446 = vmatpush2.msra.mxu0 0.0
    %447 = vmatprep.subr.mxu0 0.0
    %448 = vmatpush2.msra.mxu0 0.0
    %449 = vmatprep.subr.mxu0 0.0
    %450 = vmatpush2.msra.mxu0 0.0
    %451 = vmatprep.subr.mxu0 0.0
    %452 = vmatpush2.msra.mxu0 0.0
    %453 = vmatprep.subr.mxu0 0.0
    %454 = vmatpush2.msra.mxu0 0.0
    %455 = vmatprep.subr.mxu0 0.0
    %456 = vmatpush2.msra.mxu0 0.0
    %457 = vmatprep.subr.mxu0 0.0
    %458 = vmatpush2.msra.mxu0 0.0
    %459 = vmatprep.subr.mxu0 0.0
    %460 = vmatpush2.msra.mxu0 0.0
    %461 = vmatprep.subr.mxu0 0.0
    %462 = vmatpush2.msra.mxu0 0.0
    %463 = vmatprep.subr.mxu0 0.0
    %464 = vmatpush2.msra.mxu0 0.0
    %465 = vmatprep.subr.mxu0 0.0
    %466 = vmatpush2.msra.mxu0 0.0
    %467 = vmatprep.subr.mxu0 0.0
    %468 = vmatpush2.msra.mxu0 0.0
    %469 = vmatprep.subr.mxu0 0.0
    %470 = vmatpush2.msra.mxu0 0.0
    %471 = vmatprep.subr.mxu0 0.0
    %472 = vmatpush2.msra.mxu0 0.0
    %473 = vmatprep.subr.mxu0 0.0
    %474 = vmatpush2.msra.mxu0 0.0
    %475 = vmatprep.mubr.f32.mxu0 0.0
    %476 = vmatmul.mubr.f32.gmra.mxu0 %v409
    %v477 = vpop.f32.mrf.mxu0
    %v478 = vadd.f32 %v204, %v477
    %v479 = vpop.f32.mrf.mxu0
    %480 = vdwg.mxu0
    %v481 = vadd.f32 %v167, %v478
    %v482 = vxor.u32 %v481, 2147483648
    %v483 = vmul.f32 %v482, 1.442695
    %v484 = vpow.pop %v483
    %v485 = vadd.f32 %v484, 1.0
    %v486 = vrcp.pop %v485
    %v487 = vmul.f32 1.0, %v486
    %489 = vrot.lane.b32.xlu0 %v478, 64
    %v490 = vpop.permute.xlu0 %489
    %v492 = vmul.f32 %v487, %v490
    %494 = vrot.lane.b32.xlu0 %v492, 64
    %v495 = vpop.permute.xlu0 %494
    %v497 = vadd.f32 %v167, %v495
    %v498 = vtanh.pop %v497
    %v499 = vsub.f32 1.0, %v487
    %501 = vrot.lane.b32.xlu0 %v498, 96
    %v502 = vpop.permute.xlu0 %501
    %v504 = vmul.f32 %v499, %v502
    %v505 = vmul.f32 %v487, %v405
    %v506 = vadd.f32 %v504, %v505
    %508 = vrot.lane.b32.xlu0 %v506, 96
    %v509 = vpop.permute.xlu0 %508
    %v510 = vsel %vm65, %v509, 0
    %512 = vmatprep.subr.mxu0 0.0
    %513 = vmatpush1.msra.mxu0 0.0
    %514 = vmatprep.subr.mxu0 0.0
    %515 = vmatpush1.msra.mxu0 0.0
    %516 = vmatprep.subr.mxu0 0.0
    %517 = vmatpush1.msra.mxu0 0.0
    %518 = vmatprep.subr.mxu0 0.0
    %519 = vmatpush1.msra.mxu0 0.0
    %520 = vmatprep.subr.mxu0 0.0
    %521 = vmatpush1.msra.mxu0 0.0
    %522 = vmatprep.subr.mxu0 0.0
    %523 = vmatpush1.msra.mxu0 0.0
    %524 = vmatprep.subr.mxu0 0.0
    %525 = vmatpush1.msra.mxu0 0.0
    %526 = vmatprep.subr.mxu0 0.0
    %527 = vmatpush1.msra.mxu0 0.0
    %528 = vmatprep.subr.mxu0 0.0
    %529 = vmatpush1.msra.mxu0 0.0
    %530 = vmatprep.subr.mxu0 0.0
    %531 = vmatpush1.msra.mxu0 0.0
    %532 = vmatprep.subr.mxu0 0.0
    %533 = vmatpush1.msra.mxu0 0.0
    %534 = vmatprep.subr.mxu0 0.0
    %535 = vmatpush1.msra.mxu0 0.0
    %536 = vmatprep.subr.mxu0 0.0
    %537 = vmatpush1.msra.mxu0 %v198
    %538 = vmatprep.subr.mxu0 0.0
    %539 = vmatpush1.msra.mxu0 %v197
    %540 = vmatprep.subr.mxu0 0.0
    %541 = vmatpush1.msra.mxu0 %v196
    %542 = vmatprep.subr.mxu0 0.0
    %543 = vmatpush1.msra.mxu0 %v195
    %544 = vmatprep.subr.mxu0 0.0
    %545 = vmatpush2.msra.mxu0 0.0
    %546 = vmatprep.subr.mxu0 0.0
    %547 = vmatpush2.msra.mxu0 0.0
    %548 = vmatprep.subr.mxu0 0.0
    %549 = vmatpush2.msra.mxu0 0.0
    %550 = vmatprep.subr.mxu0 0.0
    %551 = vmatpush2.msra.mxu0 0.0
    %552 = vmatprep.subr.mxu0 0.0
    %553 = vmatpush2.msra.mxu0 0.0
    %554 = vmatprep.subr.mxu0 0.0
    %555 = vmatpush2.msra.mxu0 0.0
    %556 = vmatprep.subr.mxu0 0.0
    %557 = vmatpush2.msra.mxu0 0.0
    %558 = vmatprep.subr.mxu0 0.0
    %559 = vmatpush2.msra.mxu0 0.0
    %560 = vmatprep.subr.mxu0 0.0
    %561 = vmatpush2.msra.mxu0 0.0
    %562 = vmatprep.subr.mxu0 0.0
    %563 = vmatpush2.msra.mxu0 0.0
    %564 = vmatprep.subr.mxu0 0.0
    %565 = vmatpush2.msra.mxu0 0.0
    %566 = vmatprep.subr.mxu0 0.0
    %567 = vmatpush2.msra.mxu0 0.0
    %568 = vmatprep.subr.mxu0 0.0
    %569 = vmatpush2.msra.mxu0 0.0
    %570 = vmatprep.subr.mxu0 0.0
    %571 = vmatpush2.msra.mxu0 0.0
    %572 = vmatprep.subr.mxu0 0.0
    %573 = vmatpush2.msra.mxu0 0.0
    %574 = vmatprep.subr.mxu0 0.0
    %575 = vmatpush2.msra.mxu0 0.0
    %576 = vmatprep.mubr.f32.mxu0 0.0
    %577 = vmatmul.mubr.f32.gmra.mxu0 %v510
    %v578 = vpop.f32.mrf.mxu0
    %v579 = vadd.f32 %v204, %v578
    %v580 = vpop.f32.mrf.mxu0
    %581 = vdwg.mxu0
    %v582 = vadd.f32 %v172, %v579
    %v583 = vxor.u32 %v582, 2147483648
    %v584 = vmul.f32 %v583, 1.442695
    %v585 = vpow.pop %v584
    %v586 = vadd.f32 %v585, 1.0
    %v587 = vrcp.pop %v586
    %v588 = vmul.f32 1.0, %v587
    %590 = vrot.lane.b32.xlu0 %v579, 64
    %v591 = vpop.permute.xlu0 %590
    %v593 = vmul.f32 %v588, %v591
    %595 = vrot.lane.b32.xlu0 %v593, 64
    %v596 = vpop.permute.xlu0 %595
    %v598 = vadd.f32 %v172, %v596
    %v599 = vtanh.pop %v598
    %v600 = vsub.f32 1.0, %v588
    %602 = vrot.lane.b32.xlu0 %v599, 96
    %v603 = vpop.permute.xlu0 %602
    %v605 = vmul.f32 %v600, %v603
    %v606 = vmul.f32 %v588, %v506
    %v607 = vadd.f32 %v605, %v606
    %609 = vrot.lane.b32.xlu0 %v607, 96
    %v610 = vpop.permute.xlu0 %609
    %v611 = vsel %vm65, %v610, 0
    %613 = vmatprep.subr.mxu0 0.0
    %614 = vmatpush1.msra.mxu0 0.0
    %615 = vmatprep.subr.mxu0 0.0
    %616 = vmatpush1.msra.mxu0 0.0
    %617 = vmatprep.subr.mxu0 0.0
    %618 = vmatpush1.msra.mxu0 0.0
    %619 = vmatprep.subr.mxu0 0.0
    %620 = vmatpush1.msra.mxu0 0.0
    %621 = vmatprep.subr.mxu0 0.0
    %622 = vmatpush1.msra.mxu0 0.0
    %623 = vmatprep.subr.mxu0 0.0
    %624 = vmatpush1.msra.mxu0 0.0
    %625 = vmatprep.subr.mxu0 0.0
    %626 = vmatpush1.msra.mxu0 0.0
    %627 = vmatprep.subr.mxu0 0.0
    %628 = vmatpush1.msra.mxu0 0.0
    %629 = vmatprep.subr.mxu0 0.0
    %630 = vmatpush1.msra.mxu0 0.0
    %631 = vmatprep.subr.mxu0 0.0
    %632 = vmatpush1.msra.mxu0 0.0
    %633 = vmatprep.subr.mxu0 0.0
    %634 = vmatpush1.msra.mxu0 0.0
    %635 = vmatprep.subr.mxu0 0.0
    %636 = vmatpush1.msra.mxu0 0.0
    %637 = vmatprep.subr.mxu0 0.0
    %638 = vmatpush1.msra.mxu0 %v198
    %639 = vmatprep.subr.mxu0 0.0
    %640 = vmatpush1.msra.mxu0 %v197
    %641 = vmatprep.subr.mxu0 0.0
    %642 = vmatpush1.msra.mxu0 %v196
    %643 = vmatprep.subr.mxu0 0.0
    %644 = vmatpush1.msra.mxu0 %v195
    %645 = vmatprep.subr.mxu0 0.0
    %646 = vmatpush2.msra.mxu0 0.0
    %647 = vmatprep.subr.mxu0 0.0
    %648 = vmatpush2.msra.mxu0 0.0
    %649 = vmatprep.subr.mxu0 0.0
    %650 = vmatpush2.msra.mxu0 0.0
    %651 = vmatprep.subr.mxu0 0.0
    %652 = vmatpush2.msra.mxu0 0.0
    %653 = vmatprep.subr.mxu0 0.0
    %654 = vmatpush2.msra.mxu0 0.0
    %655 = vmatprep.subr.mxu0 0.0
    %656 = vmatpush2.msra.mxu0 0.0
    %657 = vmatprep.subr.mxu0 0.0
    %658 = vmatpush2.msra.mxu0 0.0
    %659 = vmatprep.subr.mxu0 0.0
    %660 = vmatpush2.msra.mxu0 0.0
    %661 = vmatprep.subr.mxu0 0.0
    %662 = vmatpush2.msra.mxu0 0.0
    %663 = vmatprep.subr.mxu0 0.0
    %664 = vmatpush2.msra.mxu0 0.0
    %665 = vmatprep.subr.mxu0 0.0
    %666 = vmatpush2.msra.mxu0 0.0
    %667 = vmatprep.subr.mxu0 0.0
    %668 = vmatpush2.msra.mxu0 0.0
    %669 = vmatprep.subr.mxu0 0.0
    %670 = vmatpush2.msra.mxu0 0.0
    %671 = vmatprep.subr.mxu0 0.0
    %672 = vmatpush2.msra.mxu0 0.0
    %673 = vmatprep.subr.mxu0 0.0
    %674 = vmatpush2.msra.mxu0 0.0
    %675 = vmatprep.subr.mxu0 0.0
    %676 = vmatpush2.msra.mxu0 0.0
    %677 = vmatprep.mubr.f32.mxu0 0.0
    %678 = vmatmul.mubr.f32.gmra.mxu0 %v611
    %v679 = vpop.f32.mrf.mxu0
    %v680 = vadd.f32 %v204, %v679
    %v681 = vpop.f32.mrf.mxu0
    %682 = vdwg.mxu0
    %v683 = vadd.f32 %v177, %v680
    %v684 = vxor.u32 %v683, 2147483648
    %v685 = vmul.f32 %v684, 1.442695
    %v686 = vpow.pop %v685
    %v687 = vadd.f32 %v686, 1.0
    %v688 = vrcp.pop %v687
    %v689 = vmul.f32 1.0, %v688
    %691 = vrot.lane.b32.xlu0 %v680, 64
    %v692 = vpop.permute.xlu0 %691
    %v694 = vmul.f32 %v689, %v692
    %696 = vrot.lane.b32.xlu0 %v694, 64
    %v697 = vpop.permute.xlu0 %696
    %v699 = vadd.f32 %v177, %v697
    %v700 = vtanh.pop %v699
    %v701 = vsub.f32 1.0, %v689
    %703 = vrot.lane.b32.xlu0 %v700, 96
    %v704 = vpop.permute.xlu0 %703
    %v706 = vmul.f32 %v701, %v704
    %v707 = vmul.f32 %v689, %v607
    %v708 = vadd.f32 %v706, %v707
    %710 = vrot.lane.b32.xlu0 %v708, 96
    %v711 = vpop.permute.xlu0 %710
    %v712 = vsel %vm65, %v711, 0
    %714 = vmatprep.subr.mxu0 0.0
    %715 = vmatpush1.msra.mxu0 0.0
    %716 = vmatprep.subr.mxu0 0.0
    %717 = vmatpush1.msra.mxu0 0.0
    %718 = vmatprep.subr.mxu0 0.0
    %719 = vmatpush1.msra.mxu0 0.0
    %720 = vmatprep.subr.mxu0 0.0
    %721 = vmatpush1.msra.mxu0 0.0
    %722 = vmatprep.subr.mxu0 0.0
    %723 = vmatpush1.msra.mxu0 0.0
    %724 = vmatprep.subr.mxu0 0.0
    %725 = vmatpush1.msra.mxu0 0.0
    %726 = vmatprep.subr.mxu0 0.0
    %727 = vmatpush1.msra.mxu0 0.0
    %728 = vmatprep.subr.mxu0 0.0
    %729 = vmatpush1.msra.mxu0 0.0
    %730 = vmatprep.subr.mxu0 0.0
    %731 = vmatpush1.msra.mxu0 0.0
    %732 = vmatprep.subr.mxu0 0.0
    %733 = vmatpush1.msra.mxu0 0.0
    %734 = vmatprep.subr.mxu0 0.0
    %735 = vmatpush1.msra.mxu0 0.0
    %736 = vmatprep.subr.mxu0 0.0
    %737 = vmatpush1.msra.mxu0 0.0
    %738 = vmatprep.subr.mxu0 0.0
    %739 = vmatpush1.msra.mxu0 %v198
    %740 = vmatprep.subr.mxu0 0.0
    %741 = vmatpush1.msra.mxu0 %v197
    %742 = vmatprep.subr.mxu0 0.0
    %743 = vmatpush1.msra.mxu0 %v196
    %744 = vmatprep.subr.mxu0 0.0
    %745 = vmatpush1.msra.mxu0 %v195
    %746 = vmatprep.subr.mxu0 0.0
    %747 = vmatpush2.msra.mxu0 0.0
    %748 = vmatprep.subr.mxu0 0.0
    %749 = vmatpush2.msra.mxu0 0.0
    %750 = vmatprep.subr.mxu0 0.0
    %751 = vmatpush2.msra.mxu0 0.0
    %752 = vmatprep.subr.mxu0 0.0
    %753 = vmatpush2.msra.mxu0 0.0
    %754 = vmatprep.subr.mxu0 0.0
    %755 = vmatpush2.msra.mxu0 0.0
    %756 = vmatprep.subr.mxu0 0.0
    %757 = vmatpush2.msra.mxu0 0.0
    %758 = vmatprep.subr.mxu0 0.0
    %759 = vmatpush2.msra.mxu0 0.0
    %760 = vmatprep.subr.mxu0 0.0
    %761 = vmatpush2.msra.mxu0 0.0
    %762 = vmatprep.subr.mxu0 0.0
    %763 = vmatpush2.msra.mxu0 0.0
    %764 = vmatprep.subr.mxu0 0.0
    %765 = vmatpush2.msra.mxu0 0.0
    %766 = vmatprep.subr.mxu0 0.0
    %767 = vmatpush2.msra.mxu0 0.0
    %768 = vmatprep.subr.mxu0 0.0
    %769 = vmatpush2.msra.mxu0 0.0
    %770 = vmatprep.subr.mxu0 0.0
    %771 = vmatpush2.msra.mxu0 0.0
    %772 = vmatprep.subr.mxu0 0.0
    %773 = vmatpush2.msra.mxu0 0.0
    %774 = vmatprep.subr.mxu0 0.0
    %775 = vmatpush2.msra.mxu0 0.0
    %776 = vmatprep.subr.mxu0 0.0
    %777 = vmatpush2.msra.mxu0 0.0
    %778 = vmatprep.mubr.f32.mxu0 0.0
    %779 = vmatmul.mubr.f32.gmra.mxu0 %v712
    %v780 = vpop.f32.mrf.mxu0
    %v781 = vadd.f32 %v204, %v780
    %v782 = vpop.f32.mrf.mxu0
    %783 = vdwg.mxu0
    %v784 = vadd.f32 %v182, %v781
    %v785 = vxor.u32 %v784, 2147483648
    %v786 = vmul.f32 %v785, 1.442695
    %v787 = vpow.pop %v786
    %v788 = vadd.f32 %v787, 1.0
    %v789 = vrcp.pop %v788
    %v790 = vmul.f32 1.0, %v789
    %792 = vrot.lane.b32.xlu0 %v781, 64
    %v793 = vpop.permute.xlu0 %792
    %v795 = vmul.f32 %v790, %v793
    %797 = vrot.lane.b32.xlu0 %v795, 64
    %v798 = vpop.permute.xlu0 %797
    %v800 = vadd.f32 %v182, %v798
    %v801 = vtanh.pop %v800
    %v802 = vsub.f32 1.0, %v790
    %804 = vrot.lane.b32.xlu0 %v801, 96
    %v805 = vpop.permute.xlu0 %804
    %v807 = vmul.f32 %v802, %v805
    %v808 = vmul.f32 %v790, %v708
    %v809 = vadd.f32 %v807, %v808
    %811 = vrot.lane.b32.xlu0 %v809, 96
    %v812 = vpop.permute.xlu0 %811
    %v813 = vsel %vm65, %v812, 0
    %815 = vmatprep.subr.mxu0 0.0
    %816 = vmatpush1.msra.mxu0 0.0
    %817 = vmatprep.subr.mxu0 0.0
    %818 = vmatpush1.msra.mxu0 0.0
    %819 = vmatprep.subr.mxu0 0.0
    %820 = vmatpush1.msra.mxu0 0.0
    %821 = vmatprep.subr.mxu0 0.0
    %822 = vmatpush1.msra.mxu0 0.0
    %823 = vmatprep.subr.mxu0 0.0
    %824 = vmatpush1.msra.mxu0 0.0
    %825 = vmatprep.subr.mxu0 0.0
    %826 = vmatpush1.msra.mxu0 0.0
    %827 = vmatprep.subr.mxu0 0.0
    %828 = vmatpush1.msra.mxu0 0.0
    %829 = vmatprep.subr.mxu0 0.0
    %830 = vmatpush1.msra.mxu0 0.0
    %831 = vmatprep.subr.mxu0 0.0
    %832 = vmatpush1.msra.mxu0 0.0
    %833 = vmatprep.subr.mxu0 0.0
    %834 = vmatpush1.msra.mxu0 0.0
    %835 = vmatprep.subr.mxu0 0.0
    %836 = vmatpush1.msra.mxu0 0.0
    %837 = vmatprep.subr.mxu0 0.0
    %838 = vmatpush1.msra.mxu0 0.0
    %839 = vmatprep.subr.mxu0 0.0
    %840 = vmatpush1.msra.mxu0 %v198
    %841 = vmatprep.subr.mxu0 0.0
    %842 = vmatpush1.msra.mxu0 %v197
    %843 = vmatprep.subr.mxu0 0.0
    %844 = vmatpush1.msra.mxu0 %v196
    %845 = vmatprep.subr.mxu0 0.0
    %846 = vmatpush1.msra.mxu0 %v195
    %847 = vmatprep.subr.mxu0 0.0
    %848 = vmatpush2.msra.mxu0 0.0
    %849 = vmatprep.subr.mxu0 0.0
    %850 = vmatpush2.msra.mxu0 0.0
    %851 = vmatprep.subr.mxu0 0.0
    %852 = vmatpush2.msra.mxu0 0.0
    %853 = vmatprep.subr.mxu0 0.0
    %854 = vmatpush2.msra.mxu0 0.0
    %855 = vmatprep.subr.mxu0 0.0
    %856 = vmatpush2.msra.mxu0 0.0
    %857 = vmatprep.subr.mxu0 0.0
    %858 = vmatpush2.msra.mxu0 0.0
    %859 = vmatprep.subr.mxu0 0.0
    %860 = vmatpush2.msra.mxu0 0.0
    %861 = vmatprep.subr.mxu0 0.0
    %862 = vmatpush2.msra.mxu0 0.0
    %863 = vmatprep.subr.mxu0 0.0
    %864 = vmatpush2.msra.mxu0 0.0
    %865 = vmatprep.subr.mxu0 0.0
    %866 = vmatpush2.msra.mxu0 0.0
    %867 = vmatprep.subr.mxu0 0.0
    %868 = vmatpush2.msra.mxu0 0.0
    %869 = vmatprep.subr.mxu0 0.0
    %870 = vmatpush2.msra.mxu0 0.0
    %871 = vmatprep.subr.mxu0 0.0
    %872 = vmatpush2.msra.mxu0 0.0
    %873 = vmatprep.subr.mxu0 0.0
    %874 = vmatpush2.msra.mxu0 0.0
    %875 = vmatprep.subr.mxu0 0.0
    %876 = vmatpush2.msra.mxu0 0.0
    %877 = vmatprep.subr.mxu0 0.0
    %878 = vmatpush2.msra.mxu0 0.0
    %879 = vmatprep.mubr.f32.mxu0 0.0
    %880 = vmatmul.mubr.f32.gmra.mxu0 %v813
    %v881 = vpop.f32.mrf.mxu0
    %v882 = vadd.f32 %v204, %v881
    %v883 = vpop.f32.mrf.mxu0
    %884 = vdwg.mxu0
    %v885 = vadd.f32 %v187, %v882
    %v886 = vxor.u32 %v885, 2147483648
    %v887 = vmul.f32 %v886, 1.442695
    %v888 = vpow.pop %v887
    %v889 = vadd.f32 %v888, 1.0
    %v890 = vrcp.pop %v889
    %v891 = vmul.f32 1.0, %v890
    %893 = vrot.lane.b32.xlu0 %v882, 64
    %v894 = vpop.permute.xlu0 %893
    %v896 = vmul.f32 %v891, %v894
    %898 = vrot.lane.b32.xlu0 %v896, 64
    %v899 = vpop.permute.xlu0 %898
    %v901 = vadd.f32 %v187, %v899
    %v902 = vtanh.pop %v901
    %v903 = vsub.f32 1.0, %v891
    %905 = vrot.lane.b32.xlu0 %v902, 96
    %v906 = vpop.permute.xlu0 %905
    %v908 = vmul.f32 %v903, %v906
    %v909 = vmul.f32 %v891, %v809
    %v910 = vadd.f32 %v908, %v909
    %912 = vrot.lane.b32.xlu0 %v910, 96
    %v913 = vpop.permute.xlu0 %912
    %v914 = vsel %vm65, %v913, 0
    %916 = vmatprep.subr.mxu0 0.0
    %917 = vmatpush1.msra.mxu0 0.0
    %918 = vmatprep.subr.mxu0 0.0
    %919 = vmatpush1.msra.mxu0 0.0
    %920 = vmatprep.subr.mxu0 0.0
    %921 = vmatpush1.msra.mxu0 0.0
    %922 = vmatprep.subr.mxu0 0.0
    %923 = vmatpush1.msra.mxu0 0.0
    %924 = vmatprep.subr.mxu0 0.0
    %925 = vmatpush1.msra.mxu0 0.0
    %926 = vmatprep.subr.mxu0 0.0
    %927 = vmatpush1.msra.mxu0 0.0
    %928 = vmatprep.subr.mxu0 0.0
    %929 = vmatpush1.msra.mxu0 0.0
    %930 = vmatprep.subr.mxu0 0.0
    %931 = vmatpush1.msra.mxu0 0.0
    %932 = vmatprep.subr.mxu0 0.0
    %933 = vmatpush1.msra.mxu0 0.0
    %934 = vmatprep.subr.mxu0 0.0
    %935 = vmatpush1.msra.mxu0 0.0
    %936 = vmatprep.subr.mxu0 0.0
    %937 = vmatpush1.msra.mxu0 0.0
    %938 = vmatprep.subr.mxu0 0.0
    %939 = vmatpush1.msra.mxu0 0.0
    %940 = vmatprep.subr.mxu0 0.0
    %941 = vmatpush1.msra.mxu0 %v198
    %942 = vmatprep.subr.mxu0 0.0
    %943 = vmatpush1.msra.mxu0 %v197
    %944 = vmatprep.subr.mxu0 0.0
    %945 = vmatpush1.msra.mxu0 %v196
    %946 = vmatprep.subr.mxu0 0.0
    %947 = vmatpush1.msra.mxu0 %v195
    %948 = vmatprep.subr.mxu0 0.0
    %949 = vmatpush2.msra.mxu0 0.0
    %950 = vmatprep.subr.mxu0 0.0
    %951 = vmatpush2.msra.mxu0 0.0
    %952 = vmatprep.subr.mxu0 0.0
    %953 = vmatpush2.msra.mxu0 0.0
    %954 = vmatprep.subr.mxu0 0.0
    %955 = vmatpush2.msra.mxu0 0.0
    %956 = vmatprep.subr.mxu0 0.0
    %957 = vmatpush2.msra.mxu0 0.0
    %958 = vmatprep.subr.mxu0 0.0
    %959 = vmatpush2.msra.mxu0 0.0
    %960 = vmatprep.subr.mxu0 0.0
    %961 = vmatpush2.msra.mxu0 0.0
    %962 = vmatprep.subr.mxu0 0.0
    %963 = vmatpush2.msra.mxu0 0.0
    %964 = vmatprep.subr.mxu0 0.0
    %965 = vmatpush2.msra.mxu0 0.0
    %966 = vmatprep.subr.mxu0 0.0
    %967 = vmatpush2.msra.mxu0 0.0
    %968 = vmatprep.subr.mxu0 0.0
    %969 = vmatpush2.msra.mxu0 0.0
    %970 = vmatprep.subr.mxu0 0.0
    %971 = vmatpush2.msra.mxu0 0.0
    %972 = vmatprep.subr.mxu0 0.0
    %973 = vmatpush2.msra.mxu0 0.0
    %974 = vmatprep.subr.mxu0 0.0
    %975 = vmatpush2.msra.mxu0 0.0
    %976 = vmatprep.subr.mxu0 0.0
    %977 = vmatpush2.msra.mxu0 0.0
    %978 = vmatprep.subr.mxu0 0.0
    %979 = vmatpush2.msra.mxu0 0.0
    %980 = vmatprep.mubr.f32.mxu0 0.0
    %981 = vmatmul.mubr.f32.gmra.mxu0 %v914
    %v982 = vpop.f32.mrf.mxu0
    %v983 = vadd.f32 %v204, %v982
    %v984 = vpop.f32.mrf.mxu0
    %985 = vdwg.mxu0
    %v986 = vadd.f32 %v192, %v983
    %v987 = vxor.u32 %v986, 2147483648
    %v988 = vmul.f32 %v987, 1.442695
    %v989 = vpow.pop %v988
    %v990 = vadd.f32 %v989, 1.0
    %v991 = vrcp.pop %v990
    %v992 = vmul.f32 1.0, %v991
    %994 = vrot.lane.b32.xlu0 %v983, 64
    %v995 = vpop.permute.xlu0 %994
    %v997 = vmul.f32 %v992, %v995
    %999 = vrot.lane.b32.xlu0 %v997, 64
    %v1000 = vpop.permute.xlu0 %999
    %v1002 = vadd.f32 %v192, %v1000
    %v1003 = vtanh.pop %v1002
    %v1004 = vsub.f32 1.0, %v992
    %1006 = vrot.lane.b32.xlu0 %v1003, 96
    %v1007 = vpop.permute.xlu0 %1006
    %v1009 = vmul.f32 %v1004, %v1007
    %v1010 = vmul.f32 %v992, %v910
    %v1011 = vadd.f32 %v1009, %v1010
    %s1012 = scalar_lea.vmem %s1, 32
    %v1013 = vld [vmem:[%s1012] sm:$0xff]
    %v1014 = vld [vmem:[%s1012 + $0x8] sm:$0xff]
    %v1015 = vld [vmem:[%s1012 + $0x10] sm:$0xff]
    %v1016 = vld [vmem:[%s1012 + $0x18] sm:$0xff]
    %s1017 = scalar_lea.vmem %s3, 1
    %v1018 = vld [vmem:[%s1017] sm:$0x1]
    %v1020 = vlaneseq
    %v1021 = vshrl.u32 %v1020, 7
    %v1022 = vsub.s32 0, %v1021
    %v1023 = vrot.slane %v1018, %v1022
    %1026 = vrot.lane.b32.xlu0 %v1011, 96
    %v1027 = vpop.permute.xlu0 %1026
    %v1028 = vsel %vm65, %v1027, 0
    %1030 = vmatprep.subr.mxu0 0.0
    %1031 = vmatpush1.msra.mxu0 0.0
    %1032 = vmatprep.subr.mxu0 0.0
    %1033 = vmatpush1.msra.mxu0 0.0
    %1034 = vmatprep.subr.mxu0 0.0
    %1035 = vmatpush1.msra.mxu0 0.0
    %1036 = vmatprep.subr.mxu0 0.0
    %1037 = vmatpush1.msra.mxu0 0.0
    %1038 = vmatprep.subr.mxu0 0.0
    %1039 = vmatpush1.msra.mxu0 0.0
    %1040 = vmatprep.subr.mxu0 0.0
    %1041 = vmatpush1.msra.mxu0 0.0
    %1042 = vmatprep.subr.mxu0 0.0
    %1043 = vmatpush1.msra.mxu0 0.0
    %1044 = vmatprep.subr.mxu0 0.0
    %1045 = vmatpush1.msra.mxu0 0.0
    %1046 = vmatprep.subr.mxu0 0.0
    %1047 = vmatpush1.msra.mxu0 0.0
    %1048 = vmatprep.subr.mxu0 0.0
    %1049 = vmatpush1.msra.mxu0 0.0
    %1050 = vmatprep.subr.mxu0 0.0
    %1051 = vmatpush1.msra.mxu0 0.0
    %1052 = vmatprep.subr.mxu0 0.0
    %1053 = vmatpush1.msra.mxu0 0.0
    %1054 = vmatprep.subr.mxu0 0.0
    %1055 = vmatpush1.msra.mxu0 %v1016
    %1056 = vmatprep.subr.mxu0 0.0
    %1057 = vmatpush1.msra.mxu0 %v1015
    %1058 = vmatprep.subr.mxu0 0.0
    %1059 = vmatpush1.msra.mxu0 %v1014
    %1060 = vmatprep.subr.mxu0 0.0
    %1061 = vmatpush1.msra.mxu0 %v1013
    %1062 = vmatprep.subr.mxu0 0.0
    %1063 = vmatpush2.msra.mxu0 0.0
    %1064 = vmatprep.subr.mxu0 0.0
    %1065 = vmatpush2.msra.mxu0 0.0
    %1066 = vmatprep.subr.mxu0 0.0
    %1067 = vmatpush2.msra.mxu0 0.0
    %1068 = vmatprep.subr.mxu0 0.0
    %1069 = vmatpush2.msra.mxu0 0.0
    %1070 = vmatprep.subr.mxu0 0.0
    %1071 = vmatpush2.msra.mxu0 0.0
    %1072 = vmatprep.subr.mxu0 0.0
    %1073 = vmatpush2.msra.mxu0 0.0
    %1074 = vmatprep.subr.mxu0 0.0
    %1075 = vmatpush2.msra.mxu0 0.0
    %1076 = vmatprep.subr.mxu0 0.0
    %1077 = vmatpush2.msra.mxu0 0.0
    %1078 = vmatprep.subr.mxu0 0.0
    %1079 = vmatpush2.msra.mxu0 0.0
    %1080 = vmatprep.subr.mxu0 0.0
    %1081 = vmatpush2.msra.mxu0 0.0
    %1082 = vmatprep.subr.mxu0 0.0
    %1083 = vmatpush2.msra.mxu0 0.0
    %1084 = vmatprep.subr.mxu0 0.0
    %1085 = vmatpush2.msra.mxu0 0.0
    %1086 = vmatprep.subr.mxu0 0.0
    %1087 = vmatpush2.msra.mxu0 0.0
    %1088 = vmatprep.subr.mxu0 0.0
    %1089 = vmatpush2.msra.mxu0 0.0
    %1090 = vmatprep.subr.mxu0 0.0
    %1091 = vmatpush2.msra.mxu0 0.0
    %1092 = vmatprep.subr.mxu0 0.0
    %1093 = vmatpush2.msra.mxu0 0.0
    %1094 = vmatprep.mubr.f32.mxu0 0.0
    %1095 = vmatmul.mubr.f32.gmra.mxu0 %v308
    %v1096 = vpop.f32.mrf.mxu0
    %v1097 = vadd.f32 %v1023, %v1096
    %v1098 = vpop.f32.mrf.mxu0
    %1099 = vmatprep.mubr.f32.mxu0 0.0
    %1100 = vmatmul.mubr.f32.gmra.mxu0 %v409
    %v1101 = vpop.f32.mrf.mxu0
    %v1102 = vadd.f32 %v1023, %v1101
    %v1103 = vpop.f32.mrf.mxu0
    %1104 = vmatprep.mubr.f32.mxu0 0.0
    %1105 = vmatmul.mubr.f32.gmra.mxu0 %v510
    %v1106 = vpop.f32.mrf.mxu0
    %v1107 = vadd.f32 %v1023, %v1106
    %v1108 = vpop.f32.mrf.mxu0
    %1109 = vmatprep.mubr.f32.mxu0 0.0
    %1110 = vmatmul.mubr.f32.gmra.mxu0 %v611
    %v1111 = vpop.f32.mrf.mxu0
    %v1112 = vadd.f32 %v1023, %v1111
    %v1113 = vpop.f32.mrf.mxu0
    %1114 = vmatprep.mubr.f32.mxu0 0.0
    %1115 = vmatmul.mubr.f32.gmra.mxu0 %v712
    %v1116 = vpop.f32.mrf.mxu0
    %v1117 = vadd.f32 %v1023, %v1116
    %v1118 = vpop.f32.mrf.mxu0
    %1119 = vmatprep.mubr.f32.mxu0 0.0
    %1120 = vmatmul.mubr.f32.gmra.mxu0 %v813
    %v1121 = vpop.f32.mrf.mxu0
    %v1122 = vadd.f32 %v1023, %v1121
    %v1123 = vpop.f32.mrf.mxu0
    %1124 = vmatprep.mubr.f32.mxu0 0.0
    %1125 = vmatmul.mubr.f32.gmra.mxu0 %v914
    %v1126 = vpop.f32.mrf.mxu0
    %v1127 = vadd.f32 %v1023, %v1126
    %v1128 = vpop.f32.mrf.mxu0
    %1129 = vmatprep.mubr.f32.mxu0 0.0
    %1130 = vmatmul.mubr.f32.gmra.mxu0 %v1028
    %v1131 = vpop.f32.mrf.mxu0
    %v1132 = vadd.f32 %v1023, %v1131
    %v1133 = vpop.f32.mrf.mxu0
    %1134 = vdwg.mxu0
    %s1135 = scalar_lea.vmem %s2, 32
    %v1136 = vld [vmem:[%s1135] sm:$0xff]
    %v1137 = vld [vmem:[%s1135 + $0x8] sm:$0xff]
    %v1138 = vld [vmem:[%s1135 + $0x10] sm:$0xff]
    %v1139 = vld [vmem:[%s1135 + $0x18] sm:$0xff]
    %s1140 = scalar_lea.vmem %s4, 1
    %v1141 = vld [vmem:[%s1140] sm:$0x1]
    %v1143 = vlaneseq
    %v1144 = vshrl.u32 %v1143, 7
    %v1145 = vsub.s32 0, %v1144
    %v1146 = vrot.slane %v1141, %v1145
    %1148 = vmatprep.subr.mxu0 0.0
    %1149 = vmatpush1.msra.mxu0 0.0
    %1150 = vmatprep.subr.mxu0 0.0
    %1151 = vmatpush1.msra.mxu0 0.0
    %1152 = vmatprep.subr.mxu0 0.0
    %1153 = vmatpush1.msra.mxu0 0.0
    %1154 = vmatprep.subr.mxu0 0.0
    %1155 = vmatpush1.msra.mxu0 0.0
    %1156 = vmatprep.subr.mxu0 0.0
    %1157 = vmatpush1.msra.mxu0 0.0
    %1158 = vmatprep.subr.mxu0 0.0
    %1159 = vmatpush1.msra.mxu0 0.0
    %1160 = vmatprep.subr.mxu0 0.0
    %1161 = vmatpush1.msra.mxu0 0.0
    %1162 = vmatprep.subr.mxu0 0.0
    %1163 = vmatpush1.msra.mxu0 0.0
    %1164 = vmatprep.subr.mxu0 0.0
    %1165 = vmatpush1.msra.mxu0 0.0
    %1166 = vmatprep.subr.mxu0 0.0
    %1167 = vmatpush1.msra.mxu0 0.0
    %1168 = vmatprep.subr.mxu0 0.0
    %1169 = vmatpush1.msra.mxu0 0.0
    %1170 = vmatprep.subr.mxu0 0.0
    %1171 = vmatpush1.msra.mxu0 0.0
    %1172 = vmatprep.subr.mxu0 0.0
    %1173 = vmatpush1.msra.mxu0 %v1139
    %1174 = vmatprep.subr.mxu0 0.0
    %1175 = vmatpush1.msra.mxu0 %v1138
    %1176 = vmatprep.subr.mxu0 0.0
    %1177 = vmatpush1.msra.mxu0 %v1137
    %1178 = vmatprep.subr.mxu0 0.0
    %1179 = vmatpush1.msra.mxu0 %v1136
    %1180 = vmatprep.subr.mxu0 0.0
    %1181 = vmatpush2.msra.mxu0 0.0
    %1182 = vmatprep.subr.mxu0 0.0
    %1183 = vmatpush2.msra.mxu0 0.0
    %1184 = vmatprep.subr.mxu0 0.0
    %1185 = vmatpush2.msra.mxu0 0.0
    %1186 = vmatprep.subr.mxu0 0.0
    %1187 = vmatpush2.msra.mxu0 0.0
    %1188 = vmatprep.subr.mxu0 0.0
    %1189 = vmatpush2.msra.mxu0 0.0
    %1190 = vmatprep.subr.mxu0 0.0
    %1191 = vmatpush2.msra.mxu0 0.0
    %1192 = vmatprep.subr.mxu0 0.0
    %1193 = vmatpush2.msra.mxu0 0.0
    %1194 = vmatprep.subr.mxu0 0.0
    %1195 = vmatpush2.msra.mxu0 0.0
    %1196 = vmatprep.subr.mxu0 0.0
    %1197 = vmatpush2.msra.mxu0 0.0
    %1198 = vmatprep.subr.mxu0 0.0
    %1199 = vmatpush2.msra.mxu0 0.0
    %1200 = vmatprep.subr.mxu0 0.0
    %1201 = vmatpush2.msra.mxu0 0.0
    %1202 = vmatprep.subr.mxu0 0.0
    %1203 = vmatpush2.msra.mxu0 0.0
    %1204 = vmatprep.subr.mxu0 0.0
    %1205 = vmatpush2.msra.mxu0 0.0
    %1206 = vmatprep.subr.mxu0 0.0
    %1207 = vmatpush2.msra.mxu0 0.0
    %1208 = vmatprep.subr.mxu0 0.0
    %1209 = vmatpush2.msra.mxu0 0.0
    %1210 = vmatprep.subr.mxu0 0.0
    %1211 = vmatpush2.msra.mxu0 0.0
    %1212 = vmatprep.mubr.f32.mxu0 0.0
    %1213 = vmatmul.mubr.f32.gmra.mxu0 %v207
    %v1214 = vpop.f32.mrf.mxu0
    %v1215 = vadd.f32 %v1146, %v1214
    %v1216 = vpop.f32.mrf.mxu0
    %1217 = vdwg.mxu0
    %v1218 = vadd.f32 %v1097, %v1215
    %v1219 = vxor.u32 %v1218, 2147483648
    %v1220 = vmul.f32 %v1219, 1.442695
    %v1221 = vpow.pop %v1220
    %v1222 = vadd.f32 %v1221, 1.0
    %v1223 = vrcp.pop %v1222
    %v1224 = vmul.f32 1.0, %v1223
    %1226 = vrot.lane.b32.xlu0 %v1215, 64
    %v1227 = vpop.permute.xlu0 %1226
    %v1229 = vmul.f32 %v1224, %v1227
    %1231 = vrot.lane.b32.xlu0 %v1229, 64
    %v1232 = vpop.permute.xlu0 %1231
    %v1234 = vadd.f32 %v1097, %v1232
    %v1235 = vtanh.pop %v1234
    %v1236 = vsub.f32 1.0, %v1224
    %1238 = vrot.lane.b32.xlu0 %v1235, 96
    %v1239 = vpop.permute.xlu0 %1238
    %v1241 = vmul.f32 %v1236, %v1239
    %v1242 = vmul.f32 %v1224, 0.0
    %v1243 = vadd.f32 %v1241, %v1242
    %1245 = vrot.lane.b32.xlu0 %v1243, 96
    %v1246 = vpop.permute.xlu0 %1245
    %v1247 = vsel %vm65, %v1246, 0
    %1249 = vmatprep.subr.mxu0 0.0
    %1250 = vmatpush1.msra.mxu0 0.0
    %1251 = vmatprep.subr.mxu0 0.0
    %1252 = vmatpush1.msra.mxu0 0.0
    %1253 = vmatprep.subr.mxu0 0.0
    %1254 = vmatpush1.msra.mxu0 0.0
    %1255 = vmatprep.subr.mxu0 0.0
    %1256 = vmatpush1.msra.mxu0 0.0
    %1257 = vmatprep.subr.mxu0 0.0
    %1258 = vmatpush1.msra.mxu0 0.0
    %1259 = vmatprep.subr.mxu0 0.0
    %1260 = vmatpush1.msra.mxu0 0.0
    %1261 = vmatprep.subr.mxu0 0.0
    %1262 = vmatpush1.msra.mxu0 0.0
    %1263 = vmatprep.subr.mxu0 0.0
    %1264 = vmatpush1.msra.mxu0 0.0
    %1265 = vmatprep.subr.mxu0 0.0
    %1266 = vmatpush1.msra.mxu0 0.0
    %1267 = vmatprep.subr.mxu0 0.0
    %1268 = vmatpush1.msra.mxu0 0.0
    %1269 = vmatprep.subr.mxu0 0.0
    %1270 = vmatpush1.msra.mxu0 0.0
    %1271 = vmatprep.subr.mxu0 0.0
    %1272 = vmatpush1.msra.mxu0 0.0
    %1273 = vmatprep.subr.mxu0 0.0
    %1274 = vmatpush1.msra.mxu0 %v1139
    %1275 = vmatprep.subr.mxu0 0.0
    %1276 = vmatpush1.msra.mxu0 %v1138
    %1277 = vmatprep.subr.mxu0 0.0
    %1278 = vmatpush1.msra.mxu0 %v1137
    %1279 = vmatprep.subr.mxu0 0.0
    %1280 = vmatpush1.msra.mxu0 %v1136
    %1281 = vmatprep.subr.mxu0 0.0
    %1282 = vmatpush2.msra.mxu0 0.0
    %1283 = vmatprep.subr.mxu0 0.0
    %1284 = vmatpush2.msra.mxu0 0.0
    %1285 = vmatprep.subr.mxu0 0.0
    %1286 = vmatpush2.msra.mxu0 0.0
    %1287 = vmatprep.subr.mxu0 0.0
    %1288 = vmatpush2.msra.mxu0 0.0
    %1289 = vmatprep.subr.mxu0 0.0
    %1290 = vmatpush2.msra.mxu0 0.0
    %1291 = vmatprep.subr.mxu0 0.0
    %1292 = vmatpush2.msra.mxu0 0.0
    %1293 = vmatprep.subr.mxu0 0.0
    %1294 = vmatpush2.msra.mxu0 0.0
    %1295 = vmatprep.subr.mxu0 0.0
    %1296 = vmatpush2.msra.mxu0 0.0
    %1297 = vmatprep.subr.mxu0 0.0
    %1298 = vmatpush2.msra.mxu0 0.0
    %1299 = vmatprep.subr.mxu0 0.0
    %1300 = vmatpush2.msra.mxu0 0.0
    %1301 = vmatprep.subr.mxu0 0.0
    %1302 = vmatpush2.msra.mxu0 0.0
    %1303 = vmatprep.subr.mxu0 0.0
    %1304 = vmatpush2.msra.mxu0 0.0
    %1305 = vmatprep.subr.mxu0 0.0
    %1306 = vmatpush2.msra.mxu0 0.0
    %1307 = vmatprep.subr.mxu0 0.0
    %1308 = vmatpush2.msra.mxu0 0.0
    %1309 = vmatprep.subr.mxu0 0.0
    %1310 = vmatpush2.msra.mxu0 0.0
    %1311 = vmatprep.subr.mxu0 0.0
    %1312 = vmatpush2.msra.mxu0 0.0
    %1313 = vmatprep.mubr.f32.mxu0 0.0
    %1314 = vmatmul.mubr.f32.gmra.mxu0 %v1247
    %v1315 = vpop.f32.mrf.mxu0
    %v1316 = vadd.f32 %v1146, %v1315
    %v1317 = vpop.f32.mrf.mxu0
    %1318 = vdwg.mxu0
    %v1319 = vadd.f32 %v1102, %v1316
    %v1320 = vxor.u32 %v1319, 2147483648
    %v1321 = vmul.f32 %v1320, 1.442695
    %v1322 = vpow.pop %v1321
    %v1323 = vadd.f32 %v1322, 1.0
    %v1324 = vrcp.pop %v1323
    %v1325 = vmul.f32 1.0, %v1324
    %1327 = vrot.lane.b32.xlu0 %v1316, 64
    %v1328 = vpop.permute.xlu0 %1327
    %v1330 = vmul.f32 %v1325, %v1328
    %1332 = vrot.lane.b32.xlu0 %v1330, 64
    %v1333 = vpop.permute.xlu0 %1332
    %v1335 = vadd.f32 %v1102, %v1333
    %v1336 = vtanh.pop %v1335
    %v1337 = vsub.f32 1.0, %v1325
    %1339 = vrot.lane.b32.xlu0 %v1336, 96
    %v1340 = vpop.permute.xlu0 %1339
    %v1342 = vmul.f32 %v1337, %v1340
    %v1343 = vmul.f32 %v1325, %v1243
    %v1344 = vadd.f32 %v1342, %v1343
    %1346 = vrot.lane.b32.xlu0 %v1344, 96
    %v1347 = vpop.permute.xlu0 %1346
    %v1348 = vsel %vm65, %v1347, 0
    %1350 = vmatprep.subr.mxu0 0.0
    %1351 = vmatpush1.msra.mxu0 0.0
    %1352 = vmatprep.subr.mxu0 0.0
    %1353 = vmatpush1.msra.mxu0 0.0
    %1354 = vmatprep.subr.mxu0 0.0
    %1355 = vmatpush1.msra.mxu0 0.0
    %1356 = vmatprep.subr.mxu0 0.0
    %1357 = vmatpush1.msra.mxu0 0.0
    %1358 = vmatprep.subr.mxu0 0.0
    %1359 = vmatpush1.msra.mxu0 0.0
    %1360 = vmatprep.subr.mxu0 0.0
    %1361 = vmatpush1.msra.mxu0 0.0
    %1362 = vmatprep.subr.mxu0 0.0
    %1363 = vmatpush1.msra.mxu0 0.0
    %1364 = vmatprep.subr.mxu0 0.0
    %1365 = vmatpush1.msra.mxu0 0.0
    %1366 = vmatprep.subr.mxu0 0.0
    %1367 = vmatpush1.msra.mxu0 0.0
    %1368 = vmatprep.subr.mxu0 0.0
    %1369 = vmatpush1.msra.mxu0 0.0
    %1370 = vmatprep.subr.mxu0 0.0
    %1371 = vmatpush1.msra.mxu0 0.0
    %1372 = vmatprep.subr.mxu0 0.0
    %1373 = vmatpush1.msra.mxu0 0.0
    %1374 = vmatprep.subr.mxu0 0.0
    %1375 = vmatpush1.msra.mxu0 %v1139
    %1376 = vmatprep.subr.mxu0 0.0
    %1377 = vmatpush1.msra.mxu0 %v1138
    %1378 = vmatprep.subr.mxu0 0.0
    %1379 = vmatpush1.msra.mxu0 %v1137
    %1380 = vmatprep.subr.mxu0 0.0
    %1381 = vmatpush1.msra.mxu0 %v1136
    %1382 = vmatprep.subr.mxu0 0.0
    %1383 = vmatpush2.msra.mxu0 0.0
    %1384 = vmatprep.subr.mxu0 0.0
    %1385 = vmatpush2.msra.mxu0 0.0
    %1386 = vmatprep.subr.mxu0 0.0
    %1387 = vmatpush2.msra.mxu0 0.0
    %1388 = vmatprep.subr.mxu0 0.0
    %1389 = vmatpush2.msra.mxu0 0.0
    %1390 = vmatprep.subr.mxu0 0.0
    %1391 = vmatpush2.msra.mxu0 0.0
    %1392 = vmatprep.subr.mxu0 0.0
    %1393 = vmatpush2.msra.mxu0 0.0
    %1394 = vmatprep.subr.mxu0 0.0
    %1395 = vmatpush2.msra.mxu0 0.0
    %1396 = vmatprep.subr.mxu0 0.0
    %1397 = vmatpush2.msra.mxu0 0.0
    %1398 = vmatprep.subr.mxu0 0.0
    %1399 = vmatpush2.msra.mxu0 0.0
    %1400 = vmatprep.subr.mxu0 0.0
    %1401 = vmatpush2.msra.mxu0 0.0
    %1402 = vmatprep.subr.mxu0 0.0
    %1403 = vmatpush2.msra.mxu0 0.0
    %1404 = vmatprep.subr.mxu0 0.0
    %1405 = vmatpush2.msra.mxu0 0.0
    %1406 = vmatprep.subr.mxu0 0.0
    %1407 = vmatpush2.msra.mxu0 0.0
    %1408 = vmatprep.subr.mxu0 0.0
    %1409 = vmatpush2.msra.mxu0 0.0
    %1410 = vmatprep.subr.mxu0 0.0
    %1411 = vmatpush2.msra.mxu0 0.0
    %1412 = vmatprep.subr.mxu0 0.0
    %1413 = vmatpush2.msra.mxu0 0.0
    %1414 = vmatprep.mubr.f32.mxu0 0.0
    %1415 = vmatmul.mubr.f32.gmra.mxu0 %v1348
    %v1416 = vpop.f32.mrf.mxu0
    %v1417 = vadd.f32 %v1146, %v1416
    %v1418 = vpop.f32.mrf.mxu0
    %1419 = vdwg.mxu0
    %v1420 = vadd.f32 %v1107, %v1417
    %v1421 = vxor.u32 %v1420, 2147483648
    %v1422 = vmul.f32 %v1421, 1.442695
    %v1423 = vpow.pop %v1422
    %v1424 = vadd.f32 %v1423, 1.0
    %v1425 = vrcp.pop %v1424
    %v1426 = vmul.f32 1.0, %v1425
    %1428 = vrot.lane.b32.xlu0 %v1417, 64
    %v1429 = vpop.permute.xlu0 %1428
    %v1431 = vmul.f32 %v1426, %v1429
    %1433 = vrot.lane.b32.xlu0 %v1431, 64
    %v1434 = vpop.permute.xlu0 %1433
    %v1436 = vadd.f32 %v1107, %v1434
    %v1437 = vtanh.pop %v1436
    %v1438 = vsub.f32 1.0, %v1426
    %1440 = vrot.lane.b32.xlu0 %v1437, 96
    %v1441 = vpop.permute.xlu0 %1440
    %v1443 = vmul.f32 %v1438, %v1441
    %v1444 = vmul.f32 %v1426, %v1344
    %v1445 = vadd.f32 %v1443, %v1444
    %1447 = vrot.lane.b32.xlu0 %v1445, 96
    %v1448 = vpop.permute.xlu0 %1447
    %v1449 = vsel %vm65, %v1448, 0
    %1451 = vmatprep.subr.mxu0 0.0
    %1452 = vmatpush1.msra.mxu0 0.0
    %1453 = vmatprep.subr.mxu0 0.0
    %1454 = vmatpush1.msra.mxu0 0.0
    %1455 = vmatprep.subr.mxu0 0.0
    %1456 = vmatpush1.msra.mxu0 0.0
    %1457 = vmatprep.subr.mxu0 0.0
    %1458 = vmatpush1.msra.mxu0 0.0
    %1459 = vmatprep.subr.mxu0 0.0
    %1460 = vmatpush1.msra.mxu0 0.0
    %1461 = vmatprep.subr.mxu0 0.0
    %1462 = vmatpush1.msra.mxu0 0.0
    %1463 = vmatprep.subr.mxu0 0.0
    %1464 = vmatpush1.msra.mxu0 0.0
    %1465 = vmatprep.subr.mxu0 0.0
    %1466 = vmatpush1.msra.mxu0 0.0
    %1467 = vmatprep.subr.mxu0 0.0
    %1468 = vmatpush1.msra.mxu0 0.0
    %1469 = vmatprep.subr.mxu0 0.0
    %1470 = vmatpush1.msra.mxu0 0.0
    %1471 = vmatprep.subr.mxu0 0.0
    %1472 = vmatpush1.msra.mxu0 0.0
    %1473 = vmatprep.subr.mxu0 0.0
    %1474 = vmatpush1.msra.mxu0 0.0
    %1475 = vmatprep.subr.mxu0 0.0
    %1476 = vmatpush1.msra.mxu0 %v1139
    %1477 = vmatprep.subr.mxu0 0.0
    %1478 = vmatpush1.msra.mxu0 %v1138
    %1479 = vmatprep.subr.mxu0 0.0
    %1480 = vmatpush1.msra.mxu0 %v1137
    %1481 = vmatprep.subr.mxu0 0.0
    %1482 = vmatpush1.msra.mxu0 %v1136
    %1483 = vmatprep.subr.mxu0 0.0
    %1484 = vmatpush2.msra.mxu0 0.0
    %1485 = vmatprep.subr.mxu0 0.0
    %1486 = vmatpush2.msra.mxu0 0.0
    %1487 = vmatprep.subr.mxu0 0.0
    %1488 = vmatpush2.msra.mxu0 0.0
    %1489 = vmatprep.subr.mxu0 0.0
    %1490 = vmatpush2.msra.mxu0 0.0
    %1491 = vmatprep.subr.mxu0 0.0
    %1492 = vmatpush2.msra.mxu0 0.0
    %1493 = vmatprep.subr.mxu0 0.0
    %1494 = vmatpush2.msra.mxu0 0.0
    %1495 = vmatprep.subr.mxu0 0.0
    %1496 = vmatpush2.msra.mxu0 0.0
    %1497 = vmatprep.subr.mxu0 0.0
    %1498 = vmatpush2.msra.mxu0 0.0
    %1499 = vmatprep.subr.mxu0 0.0
    %1500 = vmatpush2.msra.mxu0 0.0
    %1501 = vmatprep.subr.mxu0 0.0
    %1502 = vmatpush2.msra.mxu0 0.0
    %1503 = vmatprep.subr.mxu0 0.0
    %1504 = vmatpush2.msra.mxu0 0.0
    %1505 = vmatprep.subr.mxu0 0.0
    %1506 = vmatpush2.msra.mxu0 0.0
    %1507 = vmatprep.subr.mxu0 0.0
    %1508 = vmatpush2.msra.mxu0 0.0
    %1509 = vmatprep.subr.mxu0 0.0
    %1510 = vmatpush2.msra.mxu0 0.0
    %1511 = vmatprep.subr.mxu0 0.0
    %1512 = vmatpush2.msra.mxu0 0.0
    %1513 = vmatprep.subr.mxu0 0.0
    %1514 = vmatpush2.msra.mxu0 0.0
    %1515 = vmatprep.mubr.f32.mxu0 0.0
    %1516 = vmatmul.mubr.f32.gmra.mxu0 %v1449
    %v1517 = vpop.f32.mrf.mxu0
    %v1518 = vadd.f32 %v1146, %v1517
    %v1519 = vpop.f32.mrf.mxu0
    %1520 = vdwg.mxu0
    %v1521 = vadd.f32 %v1112, %v1518
    %v1522 = vxor.u32 %v1521, 2147483648
    %v1523 = vmul.f32 %v1522, 1.442695
    %v1524 = vpow.pop %v1523
    %v1525 = vadd.f32 %v1524, 1.0
    %v1526 = vrcp.pop %v1525
    %v1527 = vmul.f32 1.0, %v1526
    %1529 = vrot.lane.b32.xlu0 %v1518, 64
    %v1530 = vpop.permute.xlu0 %1529
    %v1532 = vmul.f32 %v1527, %v1530
    %1534 = vrot.lane.b32.xlu0 %v1532, 64
    %v1535 = vpop.permute.xlu0 %1534
    %v1537 = vadd.f32 %v1112, %v1535
    %v1538 = vtanh.pop %v1537
    %v1539 = vsub.f32 1.0, %v1527
    %1541 = vrot.lane.b32.xlu0 %v1538, 96
    %v1542 = vpop.permute.xlu0 %1541
    %v1544 = vmul.f32 %v1539, %v1542
    %v1545 = vmul.f32 %v1527, %v1445
    %v1546 = vadd.f32 %v1544, %v1545
    %1548 = vrot.lane.b32.xlu0 %v1546, 96
    %v1549 = vpop.permute.xlu0 %1548
    %v1550 = vsel %vm65, %v1549, 0
    %1552 = vmatprep.subr.mxu0 0.0
    %1553 = vmatpush1.msra.mxu0 0.0
    %1554 = vmatprep.subr.mxu0 0.0
    %1555 = vmatpush1.msra.mxu0 0.0
    %1556 = vmatprep.subr.mxu0 0.0
    %1557 = vmatpush1.msra.mxu0 0.0
    %1558 = vmatprep.subr.mxu0 0.0
    %1559 = vmatpush1.msra.mxu0 0.0
    %1560 = vmatprep.subr.mxu0 0.0
    %1561 = vmatpush1.msra.mxu0 0.0
    %1562 = vmatprep.subr.mxu0 0.0
    %1563 = vmatpush1.msra.mxu0 0.0
    %1564 = vmatprep.subr.mxu0 0.0
    %1565 = vmatpush1.msra.mxu0 0.0
    %1566 = vmatprep.subr.mxu0 0.0
    %1567 = vmatpush1.msra.mxu0 0.0
    %1568 = vmatprep.subr.mxu0 0.0
    %1569 = vmatpush1.msra.mxu0 0.0
    %1570 = vmatprep.subr.mxu0 0.0
    %1571 = vmatpush1.msra.mxu0 0.0
    %1572 = vmatprep.subr.mxu0 0.0
    %1573 = vmatpush1.msra.mxu0 0.0
    %1574 = vmatprep.subr.mxu0 0.0
    %1575 = vmatpush1.msra.mxu0 0.0
    %1576 = vmatprep.subr.mxu0 0.0
    %1577 = vmatpush1.msra.mxu0 %v1139
    %1578 = vmatprep.subr.mxu0 0.0
    %1579 = vmatpush1.msra.mxu0 %v1138
    %1580 = vmatprep.subr.mxu0 0.0
    %1581 = vmatpush1.msra.mxu0 %v1137
    %1582 = vmatprep.subr.mxu0 0.0
    %1583 = vmatpush1.msra.mxu0 %v1136
    %1584 = vmatprep.subr.mxu0 0.0
    %1585 = vmatpush2.msra.mxu0 0.0
    %1586 = vmatprep.subr.mxu0 0.0
    %1587 = vmatpush2.msra.mxu0 0.0
    %1588 = vmatprep.subr.mxu0 0.0
    %1589 = vmatpush2.msra.mxu0 0.0
    %1590 = vmatprep.subr.mxu0 0.0
    %1591 = vmatpush2.msra.mxu0 0.0
    %1592 = vmatprep.subr.mxu0 0.0
    %1593 = vmatpush2.msra.mxu0 0.0
    %1594 = vmatprep.subr.mxu0 0.0
    %1595 = vmatpush2.msra.mxu0 0.0
    %1596 = vmatprep.subr.mxu0 0.0
    %1597 = vmatpush2.msra.mxu0 0.0
    %1598 = vmatprep.subr.mxu0 0.0
    %1599 = vmatpush2.msra.mxu0 0.0
    %1600 = vmatprep.subr.mxu0 0.0
    %1601 = vmatpush2.msra.mxu0 0.0
    %1602 = vmatprep.subr.mxu0 0.0
    %1603 = vmatpush2.msra.mxu0 0.0
    %1604 = vmatprep.subr.mxu0 0.0
    %1605 = vmatpush2.msra.mxu0 0.0
    %1606 = vmatprep.subr.mxu0 0.0
    %1607 = vmatpush2.msra.mxu0 0.0
    %1608 = vmatprep.subr.mxu0 0.0
    %1609 = vmatpush2.msra.mxu0 0.0
    %1610 = vmatprep.subr.mxu0 0.0
    %1611 = vmatpush2.msra.mxu0 0.0
    %1612 = vmatprep.subr.mxu0 0.0
    %1613 = vmatpush2.msra.mxu0 0.0
    %1614 = vmatprep.subr.mxu0 0.0
    %1615 = vmatpush2.msra.mxu0 0.0
    %1616 = vmatprep.mubr.f32.mxu0 0.0
    %1617 = vmatmul.mubr.f32.gmra.mxu0 %v1550
    %v1618 = vpop.f32.mrf.mxu0
    %v1619 = vadd.f32 %v1146, %v1618
    %v1620 = vpop.f32.mrf.mxu0
    %1621 = vdwg.mxu0
    %v1622 = vadd.f32 %v1117, %v1619
    %v1623 = vxor.u32 %v1622, 2147483648
    %v1624 = vmul.f32 %v1623, 1.442695
    %v1625 = vpow.pop %v1624
    %v1626 = vadd.f32 %v1625, 1.0
    %v1627 = vrcp.pop %v1626
    %v1628 = vmul.f32 1.0, %v1627
    %1630 = vrot.lane.b32.xlu0 %v1619, 64
    %v1631 = vpop.permute.xlu0 %1630
    %v1633 = vmul.f32 %v1628, %v1631
    %1635 = vrot.lane.b32.xlu0 %v1633, 64
    %v1636 = vpop.permute.xlu0 %1635
    %v1638 = vadd.f32 %v1117, %v1636
    %v1639 = vtanh.pop %v1638
    %v1640 = vsub.f32 1.0, %v1628
    %1642 = vrot.lane.b32.xlu0 %v1639, 96
    %v1643 = vpop.permute.xlu0 %1642
    %v1645 = vmul.f32 %v1640, %v1643
    %v1646 = vmul.f32 %v1628, %v1546
    %v1647 = vadd.f32 %v1645, %v1646
    %1649 = vrot.lane.b32.xlu0 %v1647, 96
    %v1650 = vpop.permute.xlu0 %1649
    %v1651 = vsel %vm65, %v1650, 0
    %1653 = vmatprep.subr.mxu0 0.0
    %1654 = vmatpush1.msra.mxu0 0.0
    %1655 = vmatprep.subr.mxu0 0.0
    %1656 = vmatpush1.msra.mxu0 0.0
    %1657 = vmatprep.subr.mxu0 0.0
    %1658 = vmatpush1.msra.mxu0 0.0
    %1659 = vmatprep.subr.mxu0 0.0
    %1660 = vmatpush1.msra.mxu0 0.0
    %1661 = vmatprep.subr.mxu0 0.0
    %1662 = vmatpush1.msra.mxu0 0.0
    %1663 = vmatprep.subr.mxu0 0.0
    %1664 = vmatpush1.msra.mxu0 0.0
    %1665 = vmatprep.subr.mxu0 0.0
    %1666 = vmatpush1.msra.mxu0 0.0
    %1667 = vmatprep.subr.mxu0 0.0
    %1668 = vmatpush1.msra.mxu0 0.0
    %1669 = vmatprep.subr.mxu0 0.0
    %1670 = vmatpush1.msra.mxu0 0.0
    %1671 = vmatprep.subr.mxu0 0.0
    %1672 = vmatpush1.msra.mxu0 0.0
    %1673 = vmatprep.subr.mxu0 0.0
    %1674 = vmatpush1.msra.mxu0 0.0
    %1675 = vmatprep.subr.mxu0 0.0
    %1676 = vmatpush1.msra.mxu0 0.0
    %1677 = vmatprep.subr.mxu0 0.0
    %1678 = vmatpush1.msra.mxu0 %v1139
    %1679 = vmatprep.subr.mxu0 0.0
    %1680 = vmatpush1.msra.mxu0 %v1138
    %1681 = vmatprep.subr.mxu0 0.0
    %1682 = vmatpush1.msra.mxu0 %v1137
    %1683 = vmatprep.subr.mxu0 0.0
    %1684 = vmatpush1.msra.mxu0 %v1136
    %1685 = vmatprep.subr.mxu0 0.0
    %1686 = vmatpush2.msra.mxu0 0.0
    %1687 = vmatprep.subr.mxu0 0.0
    %1688 = vmatpush2.msra.mxu0 0.0
    %1689 = vmatprep.subr.mxu0 0.0
    %1690 = vmatpush2.msra.mxu0 0.0
    %1691 = vmatprep.subr.mxu0 0.0
    %1692 = vmatpush2.msra.mxu0 0.0
    %1693 = vmatprep.subr.mxu0 0.0
    %1694 = vmatpush2.msra.mxu0 0.0
    %1695 = vmatprep.subr.mxu0 0.0
    %1696 = vmatpush2.msra.mxu0 0.0
    %1697 = vmatprep.subr.mxu0 0.0
    %1698 = vmatpush2.msra.mxu0 0.0
    %1699 = vmatprep.subr.mxu0 0.0
    %1700 = vmatpush2.msra.mxu0 0.0
    %1701 = vmatprep.subr.mxu0 0.0
    %1702 = vmatpush2.msra.mxu0 0.0
    %1703 = vmatprep.subr.mxu0 0.0
    %1704 = vmatpush2.msra.mxu0 0.0
    %1705 = vmatprep.subr.mxu0 0.0
    %1706 = vmatpush2.msra.mxu0 0.0
    %1707 = vmatprep.subr.mxu0 0.0
    %1708 = vmatpush2.msra.mxu0 0.0
    %1709 = vmatprep.subr.mxu0 0.0
    %1710 = vmatpush2.msra.mxu0 0.0
    %1711 = vmatprep.subr.mxu0 0.0
    %1712 = vmatpush2.msra.mxu0 0.0
    %1713 = vmatprep.subr.mxu0 0.0
    %1714 = vmatpush2.msra.mxu0 0.0
    %1715 = vmatprep.subr.mxu0 0.0
    %1716 = vmatpush2.msra.mxu0 0.0
    %1717 = vmatprep.mubr.f32.mxu0 0.0
    %1718 = vmatmul.mubr.f32.gmra.mxu0 %v1651
    %v1719 = vpop.f32.mrf.mxu0
    %v1720 = vadd.f32 %v1146, %v1719
    %v1721 = vpop.f32.mrf.mxu0
    %1722 = vdwg.mxu0
    %v1723 = vadd.f32 %v1122, %v1720
    %v1724 = vxor.u32 %v1723, 2147483648
    %v1725 = vmul.f32 %v1724, 1.442695
    %v1726 = vpow.pop %v1725
    %v1727 = vadd.f32 %v1726, 1.0
    %v1728 = vrcp.pop %v1727
    %v1729 = vmul.f32 1.0, %v1728
    %1731 = vrot.lane.b32.xlu0 %v1720, 64
    %v1732 = vpop.permute.xlu0 %1731
    %v1734 = vmul.f32 %v1729, %v1732
    %1736 = vrot.lane.b32.xlu0 %v1734, 64
    %v1737 = vpop.permute.xlu0 %1736
    %v1739 = vadd.f32 %v1122, %v1737
    %v1740 = vtanh.pop %v1739
    %v1741 = vsub.f32 1.0, %v1729
    %1743 = vrot.lane.b32.xlu0 %v1740, 96
    %v1744 = vpop.permute.xlu0 %1743
    %v1746 = vmul.f32 %v1741, %v1744
    %v1747 = vmul.f32 %v1729, %v1647
    %v1748 = vadd.f32 %v1746, %v1747
    %1750 = vrot.lane.b32.xlu0 %v1748, 96
    %v1751 = vpop.permute.xlu0 %1750
    %v1752 = vsel %vm65, %v1751, 0
    %1754 = vmatprep.subr.mxu0 0.0
    %1755 = vmatpush1.msra.mxu0 0.0
    %1756 = vmatprep.subr.mxu0 0.0
    %1757 = vmatpush1.msra.mxu0 0.0
    %1758 = vmatprep.subr.mxu0 0.0
    %1759 = vmatpush1.msra.mxu0 0.0
    %1760 = vmatprep.subr.mxu0 0.0
    %1761 = vmatpush1.msra.mxu0 0.0
    %1762 = vmatprep.subr.mxu0 0.0
    %1763 = vmatpush1.msra.mxu0 0.0
    %1764 = vmatprep.subr.mxu0 0.0
    %1765 = vmatpush1.msra.mxu0 0.0
    %1766 = vmatprep.subr.mxu0 0.0
    %1767 = vmatpush1.msra.mxu0 0.0
    %1768 = vmatprep.subr.mxu0 0.0
    %1769 = vmatpush1.msra.mxu0 0.0
    %1770 = vmatprep.subr.mxu0 0.0
    %1771 = vmatpush1.msra.mxu0 0.0
    %1772 = vmatprep.subr.mxu0 0.0
    %1773 = vmatpush1.msra.mxu0 0.0
    %1774 = vmatprep.subr.mxu0 0.0
    %1775 = vmatpush1.msra.mxu0 0.0
    %1776 = vmatprep.subr.mxu0 0.0
    %1777 = vmatpush1.msra.mxu0 0.0
    %1778 = vmatprep.subr.mxu0 0.0
    %1779 = vmatpush1.msra.mxu0 %v1139
    %1780 = vmatprep.subr.mxu0 0.0
    %1781 = vmatpush1.msra.mxu0 %v1138
    %1782 = vmatprep.subr.mxu0 0.0
    %1783 = vmatpush1.msra.mxu0 %v1137
    %1784 = vmatprep.subr.mxu0 0.0
    %1785 = vmatpush1.msra.mxu0 %v1136
    %1786 = vmatprep.subr.mxu0 0.0
    %1787 = vmatpush2.msra.mxu0 0.0
    %1788 = vmatprep.subr.mxu0 0.0
    %1789 = vmatpush2.msra.mxu0 0.0
    %1790 = vmatprep.subr.mxu0 0.0
    %1791 = vmatpush2.msra.mxu0 0.0
    %1792 = vmatprep.subr.mxu0 0.0
    %1793 = vmatpush2.msra.mxu0 0.0
    %1794 = vmatprep.subr.mxu0 0.0
    %1795 = vmatpush2.msra.mxu0 0.0
    %1796 = vmatprep.subr.mxu0 0.0
    %1797 = vmatpush2.msra.mxu0 0.0
    %1798 = vmatprep.subr.mxu0 0.0
    %1799 = vmatpush2.msra.mxu0 0.0
    %1800 = vmatprep.subr.mxu0 0.0
    %1801 = vmatpush2.msra.mxu0 0.0
    %1802 = vmatprep.subr.mxu0 0.0
    %1803 = vmatpush2.msra.mxu0 0.0
    %1804 = vmatprep.subr.mxu0 0.0
    %1805 = vmatpush2.msra.mxu0 0.0
    %1806 = vmatprep.subr.mxu0 0.0
    %1807 = vmatpush2.msra.mxu0 0.0
    %1808 = vmatprep.subr.mxu0 0.0
    %1809 = vmatpush2.msra.mxu0 0.0
    %1810 = vmatprep.subr.mxu0 0.0
    %1811 = vmatpush2.msra.mxu0 0.0
    %1812 = vmatprep.subr.mxu0 0.0
    %1813 = vmatpush2.msra.mxu0 0.0
    %1814 = vmatprep.subr.mxu0 0.0
    %1815 = vmatpush2.msra.mxu0 0.0
    %1816 = vmatprep.subr.mxu0 0.0
    %1817 = vmatpush2.msra.mxu0 0.0
    %1818 = vmatprep.mubr.f32.mxu0 0.0
    %1819 = vmatmul.mubr.f32.gmra.mxu0 %v1752
    %v1820 = vpop.f32.mrf.mxu0
    %v1821 = vadd.f32 %v1146, %v1820
    %v1822 = vpop.f32.mrf.mxu0
    %1823 = vdwg.mxu0
    %v1824 = vadd.f32 %v1127, %v1821
    %v1825 = vxor.u32 %v1824, 2147483648
    %v1826 = vmul.f32 %v1825, 1.442695
    %v1827 = vpow.pop %v1826
    %v1828 = vadd.f32 %v1827, 1.0
    %v1829 = vrcp.pop %v1828
    %v1830 = vmul.f32 1.0, %v1829
    %1832 = vrot.lane.b32.xlu0 %v1821, 64
    %v1833 = vpop.permute.xlu0 %1832
    %v1835 = vmul.f32 %v1830, %v1833
    %1837 = vrot.lane.b32.xlu0 %v1835, 64
    %v1838 = vpop.permute.xlu0 %1837
    %v1840 = vadd.f32 %v1127, %v1838
    %v1841 = vtanh.pop %v1840
    %v1842 = vsub.f32 1.0, %v1830
    %1844 = vrot.lane.b32.xlu0 %v1841, 96
    %v1845 = vpop.permute.xlu0 %1844
    %v1847 = vmul.f32 %v1842, %v1845
    %v1848 = vmul.f32 %v1830, %v1748
    %v1849 = vadd.f32 %v1847, %v1848
    %1851 = vrot.lane.b32.xlu0 %v1849, 96
    %v1852 = vpop.permute.xlu0 %1851
    %v1853 = vsel %vm65, %v1852, 0
    %1855 = vmatprep.subr.mxu0 0.0
    %1856 = vmatpush1.msra.mxu0 0.0
    %1857 = vmatprep.subr.mxu0 0.0
    %1858 = vmatpush1.msra.mxu0 0.0
    %1859 = vmatprep.subr.mxu0 0.0
    %1860 = vmatpush1.msra.mxu0 0.0
    %1861 = vmatprep.subr.mxu0 0.0
    %1862 = vmatpush1.msra.mxu0 0.0
    %1863 = vmatprep.subr.mxu0 0.0
    %1864 = vmatpush1.msra.mxu0 0.0
    %1865 = vmatprep.subr.mxu0 0.0
    %1866 = vmatpush1.msra.mxu0 0.0
    %1867 = vmatprep.subr.mxu0 0.0
    %1868 = vmatpush1.msra.mxu0 0.0
    %1869 = vmatprep.subr.mxu0 0.0
    %1870 = vmatpush1.msra.mxu0 0.0
    %1871 = vmatprep.subr.mxu0 0.0
    %1872 = vmatpush1.msra.mxu0 0.0
    %1873 = vmatprep.subr.mxu0 0.0
    %1874 = vmatpush1.msra.mxu0 0.0
    %1875 = vmatprep.subr.mxu0 0.0
    %1876 = vmatpush1.msra.mxu0 0.0
    %1877 = vmatprep.subr.mxu0 0.0
    %1878 = vmatpush1.msra.mxu0 0.0
    %1879 = vmatprep.subr.mxu0 0.0
    %1880 = vmatpush1.msra.mxu0 %v1139
    %1881 = vmatprep.subr.mxu0 0.0
    %1882 = vmatpush1.msra.mxu0 %v1138
    %1883 = vmatprep.subr.mxu0 0.0
    %1884 = vmatpush1.msra.mxu0 %v1137
    %1885 = vmatprep.subr.mxu0 0.0
    %1886 = vmatpush1.msra.mxu0 %v1136
    %1887 = vmatprep.subr.mxu0 0.0
    %1888 = vmatpush2.msra.mxu0 0.0
    %1889 = vmatprep.subr.mxu0 0.0
    %1890 = vmatpush2.msra.mxu0 0.0
    %1891 = vmatprep.subr.mxu0 0.0
    %1892 = vmatpush2.msra.mxu0 0.0
    %1893 = vmatprep.subr.mxu0 0.0
    %1894 = vmatpush2.msra.mxu0 0.0
    %1895 = vmatprep.subr.mxu0 0.0
    %1896 = vmatpush2.msra.mxu0 0.0
    %1897 = vmatprep.subr.mxu0 0.0
    %1898 = vmatpush2.msra.mxu0 0.0
    %1899 = vmatprep.subr.mxu0 0.0
    %1900 = vmatpush2.msra.mxu0 0.0
    %1901 = vmatprep.subr.mxu0 0.0
    %1902 = vmatpush2.msra.mxu0 0.0
    %1903 = vmatprep.subr.mxu0 0.0
    %1904 = vmatpush2.msra.mxu0 0.0
    %1905 = vmatprep.subr.mxu0 0.0
    %1906 = vmatpush2.msra.mxu0 0.0
    %1907 = vmatprep.subr.mxu0 0.0
    %1908 = vmatpush2.msra.mxu0 0.0
    %1909 = vmatprep.subr.mxu0 0.0
    %1910 = vmatpush2.msra.mxu0 0.0
    %1911 = vmatprep.subr.mxu0 0.0
    %1912 = vmatpush2.msra.mxu0 0.0
    %1913 = vmatprep.subr.mxu0 0.0
    %1914 = vmatpush2.msra.mxu0 0.0
    %1915 = vmatprep.subr.mxu0 0.0
    %1916 = vmatpush2.msra.mxu0 0.0
    %1917 = vmatprep.subr.mxu0 0.0
    %1918 = vmatpush2.msra.mxu0 0.0
    %1919 = vmatprep.mubr.f32.mxu0 0.0
    %1920 = vmatmul.mubr.f32.gmra.mxu0 %v1853
    %v1921 = vpop.f32.mrf.mxu0
    %v1922 = vadd.f32 %v1146, %v1921
    %v1923 = vpop.f32.mrf.mxu0
    %1924 = vdwg.mxu0
    %v1925 = vadd.f32 %v1132, %v1922
    %v1926 = vxor.u32 %v1925, 2147483648
    %v1927 = vmul.f32 %v1926, 1.442695
    %v1928 = vpow.pop %v1927
    %v1929 = vadd.f32 %v1928, 1.0
    %v1930 = vrcp.pop %v1929
    %v1931 = vmul.f32 1.0, %v1930
    %1933 = vrot.lane.b32.xlu0 %v1922, 64
    %v1934 = vpop.permute.xlu0 %1933
    %v1936 = vmul.f32 %v1931, %v1934
    %1938 = vrot.lane.b32.xlu0 %v1936, 64
    %v1939 = vpop.permute.xlu0 %1938
    %v1941 = vadd.f32 %v1132, %v1939
    %v1942 = vtanh.pop %v1941
    %v1943 = vsub.f32 1.0, %v1931
    %1945 = vrot.lane.b32.xlu0 %v1942, 96
    %v1946 = vpop.permute.xlu0 %1945
    %v1948 = vmul.f32 %v1943, %v1946
    %v1949 = vmul.f32 %v1931, %v1849
    %v1950 = vadd.f32 %v1948, %v1949
    %v1951 = vld [vmem:[#allocation2] sm:$0xff]
    %v1952 = vld [vmem:[#allocation2 + $0x8] sm:$0xff]
    %v1953 = vld [vmem:[#allocation2 + $0x10] sm:$0xff]
    %v1954 = vld [vmem:[#allocation2 + $0x18] sm:$0xff]
    %v1955 = vld [vmem:[%s6] sm:$0x1]
    %v1957 = vlaneseq
    %v1958 = vshrl.u32 %v1957, 7
    %v1959 = vsub.s32 0, %v1958
    %v1960 = vrot.slane %v1955, %v1959
    %1963 = vrot.lane.b32.xlu0 %v1950, 96
    %v1964 = vpop.permute.xlu0 %1963
    %v1965 = vsel %vm65, %v1964, 0
    %1967 = vmatprep.subr.mxu0 0.0
    %1968 = vmatpush1.msra.mxu0 0.0
    %1969 = vmatprep.subr.mxu0 0.0
    %1970 = vmatpush1.msra.mxu0 0.0
    %1971 = vmatprep.subr.mxu0 0.0
    %1972 = vmatpush1.msra.mxu0 0.0
    %1973 = vmatprep.subr.mxu0 0.0
    %1974 = vmatpush1.msra.mxu0 0.0
    %1975 = vmatprep.subr.mxu0 0.0
    %1976 = vmatpush1.msra.mxu0 0.0
    %1977 = vmatprep.subr.mxu0 0.0
    %1978 = vmatpush1.msra.mxu0 0.0
    %1979 = vmatprep.subr.mxu0 0.0
    %1980 = vmatpush1.msra.mxu0 0.0
    %1981 = vmatprep.subr.mxu0 0.0
    %1982 = vmatpush1.msra.mxu0 0.0
    %1983 = vmatprep.subr.mxu0 0.0
    %1984 = vmatpush1.msra.mxu0 0.0
    %1985 = vmatprep.subr.mxu0 0.0
    %1986 = vmatpush1.msra.mxu0 0.0
    %1987 = vmatprep.subr.mxu0 0.0
    %1988 = vmatpush1.msra.mxu0 0.0
    %1989 = vmatprep.subr.mxu0 0.0
    %1990 = vmatpush1.msra.mxu0 0.0
    %1991 = vmatprep.subr.mxu0 0.0
    %1992 = vmatpush1.msra.mxu0 %v1954
    %1993 = vmatprep.subr.mxu0 0.0
    %1994 = vmatpush1.msra.mxu0 %v1953
    %1995 = vmatprep.subr.mxu0 0.0
    %1996 = vmatpush1.msra.mxu0 %v1952
    %1997 = vmatprep.subr.mxu0 0.0
    %1998 = vmatpush1.msra.mxu0 %v1951
    %1999 = vmatprep.subr.mxu0 0.0
    %2000 = vmatpush2.msra.mxu0 0.0
    %2001 = vmatprep.subr.mxu0 0.0
    %2002 = vmatpush2.msra.mxu0 0.0
    %2003 = vmatprep.subr.mxu0 0.0
    %2004 = vmatpush2.msra.mxu0 0.0
    %2005 = vmatprep.subr.mxu0 0.0
    %2006 = vmatpush2.msra.mxu0 0.0
    %2007 = vmatprep.subr.mxu0 0.0
    %2008 = vmatpush2.msra.mxu0 0.0
    %2009 = vmatprep.subr.mxu0 0.0
    %2010 = vmatpush2.msra.mxu0 0.0
    %2011 = vmatprep.subr.mxu0 0.0
    %2012 = vmatpush2.msra.mxu0 0.0
    %2013 = vmatprep.subr.mxu0 0.0
    %2014 = vmatpush2.msra.mxu0 0.0
    %2015 = vmatprep.subr.mxu0 0.0
    %2016 = vmatpush2.msra.mxu0 0.0
    %2017 = vmatprep.subr.mxu0 0.0
    %2018 = vmatpush2.msra.mxu0 0.0
    %2019 = vmatprep.subr.mxu0 0.0
    %2020 = vmatpush2.msra.mxu0 0.0
    %2021 = vmatprep.subr.mxu0 0.0
    %2022 = vmatpush2.msra.mxu0 0.0
    %2023 = vmatprep.subr.mxu0 0.0
    %2024 = vmatpush2.msra.mxu0 0.0
    %2025 = vmatprep.subr.mxu0 0.0
    %2026 = vmatpush2.msra.mxu0 0.0
    %2027 = vmatprep.subr.mxu0 0.0
    %2028 = vmatpush2.msra.mxu0 0.0
    %2029 = vmatprep.subr.mxu0 0.0
    %2030 = vmatpush2.msra.mxu0 0.0
    %2031 = vmatprep.mubr.f32.mxu0 0.0
    %2032 = vmatmul.mubr.f32.gmra.mxu0 %v1965
    %v2033 = vpop.f32.mrf.mxu0
    %v2034 = vadd.f32 %v1960, %v2033
    %v2035 = vpop.f32.mrf.mxu0
    %2036 = vdwg.mxu0
    %v2037 = vmax.f32 %v2034, 0.0
    %v2038 = vld [vmem:[%s7] sm:$0xff]
    %v2039 = vld [vmem:[%s7 + $0x8] sm:$0xff]
    %v2040 = vld [vmem:[%s7 + $0x10] sm:$0xff]
    %v2041 = vld [vmem:[%s7 + $0x18] sm:$0xff]
    %v2042 = vld [vmem:[%s8] sm:$0x1]
    %v2044 = vlaneseq
    %v2045 = vshrl.u32 %v2044, 7
    %v2046 = vsub.s32 0, %v2045
    %v2047 = vrot.slane %v2042, %v2046
    %v2050 = vsel %vm65, %v2037, 0
    %2052 = vmatprep.subr.mxu0 0.0
    %2053 = vmatpush1.msra.mxu0 0.0
    %2054 = vmatprep.subr.mxu0 0.0
    %2055 = vmatpush1.msra.mxu0 0.0
    %2056 = vmatprep.subr.mxu0 0.0
    %2057 = vmatpush1.msra.mxu0 0.0
    %2058 = vmatprep.subr.mxu0 0.0
    %2059 = vmatpush1.msra.mxu0 0.0
    %2060 = vmatprep.subr.mxu0 0.0
    %2061 = vmatpush1.msra.mxu0 0.0
    %2062 = vmatprep.subr.mxu0 0.0
    %2063 = vmatpush1.msra.mxu0 0.0
    %2064 = vmatprep.subr.mxu0 0.0
    %2065 = vmatpush1.msra.mxu0 0.0
    %2066 = vmatprep.subr.mxu0 0.0
    %2067 = vmatpush1.msra.mxu0 0.0
    %2068 = vmatprep.subr.mxu0 0.0
    %2069 = vmatpush1.msra.mxu0 0.0
    %2070 = vmatprep.subr.mxu0 0.0
    %2071 = vmatpush1.msra.mxu0 0.0
    %2072 = vmatprep.subr.mxu0 0.0
    %2073 = vmatpush1.msra.mxu0 0.0
    %2074 = vmatprep.subr.mxu0 0.0
    %2075 = vmatpush1.msra.mxu0 0.0
    %2076 = vmatprep.subr.mxu0 0.0
    %2077 = vmatpush1.msra.mxu0 %v2041
    %2078 = vmatprep.subr.mxu0 0.0
    %2079 = vmatpush1.msra.mxu0 %v2040
    %2080 = vmatprep.subr.mxu0 0.0
    %2081 = vmatpush1.msra.mxu0 %v2039
    %2082 = vmatprep.subr.mxu0 0.0
    %2083 = vmatpush1.msra.mxu0 %v2038
    %2084 = vmatprep.subr.mxu0 0.0
    %2085 = vmatpush2.msra.mxu0 0.0
    %2086 = vmatprep.subr.mxu0 0.0
    %2087 = vmatpush2.msra.mxu0 0.0
    %2088 = vmatprep.subr.mxu0 0.0
    %2089 = vmatpush2.msra.mxu0 0.0
    %2090 = vmatprep.subr.mxu0 0.0
    %2091 = vmatpush2.msra.mxu0 0.0
    %2092 = vmatprep.subr.mxu0 0.0
    %2093 = vmatpush2.msra.mxu0 0.0
    %2094 = vmatprep.subr.mxu0 0.0
    %2095 = vmatpush2.msra.mxu0 0.0
    %2096 = vmatprep.subr.mxu0 0.0
    %2097 = vmatpush2.msra.mxu0 0.0
    %2098 = vmatprep.subr.mxu0 0.0
    %2099 = vmatpush2.msra.mxu0 0.0
    %2100 = vmatprep.subr.mxu0 0.0
    %2101 = vmatpush2.msra.mxu0 0.0
    %2102 = vmatprep.subr.mxu0 0.0
    %2103 = vmatpush2.msra.mxu0 0.0
    %2104 = vmatprep.subr.mxu0 0.0
    %2105 = vmatpush2.msra.mxu0 0.0
    %2106 = vmatprep.subr.mxu0 0.0
    %2107 = vmatpush2.msra.mxu0 0.0
    %2108 = vmatprep.subr.mxu0 0.0
    %2109 = vmatpush2.msra.mxu0 0.0
    %2110 = vmatprep.subr.mxu0 0.0
    %2111 = vmatpush2.msra.mxu0 0.0
    %2112 = vmatprep.subr.mxu0 0.0
    %2113 = vmatpush2.msra.mxu0 0.0
    %2114 = vmatprep.subr.mxu0 0.0
    %2115 = vmatpush2.msra.mxu0 0.0
    %2116 = vmatprep.mubr.f32.mxu0 0.0
    %2117 = vmatmul.mubr.f32.gmra.mxu0 %v2050
    %v2118 = vpop.f32.mrf.mxu0
    %v2119 = vadd.f32 %v2047, %v2118
    %v2120 = vpop.f32.mrf.mxu0
    %2121 = vdwg.mxu0
    %vm2122 = vcmask 31744
    %2123 = vst.msk [vmem:[%s9] sm:$0xff] %vm2122, %v2119
    // Predicated region
    $region42: #{grumodel_forward.1} parent=1 // pred_check
      _
    $region43: #{grumodel_forward.1} parent=1 // pred_check_branch
      %2125 = sbr.rel (0) target = $region45
    $region44: #{grumodel_forward.1} parent=1 // pred_region
      _
    $region45: #{grumodel_forward.1} parent=1 // pred_fallthru
      _
    // Predicated region
    $region46: #{grumodel_forward.1} parent=1 // pred_check
      _
    $region47: #{grumodel_forward.1} parent=1 // pred_check_branch
      %2127 = sbr.rel (0) target = $region49
    $region48: #{grumodel_forward.1} parent=1 // pred_region
      _
    $region49: #{grumodel_forward.1} parent=1 // pred_fallthru
      _
    %2128 = vsyncpa [#allocation3], 1

</llo_original>
